<compile_context>
chip_gen: v6e
topology: v6e:2x2x1
jax: 0.10.0
libtpu: 0.0.40
codegen_flags: <defaults>
</compile_context>

<pallas_src>
import functools

import jax
import jax.numpy as jnp
from jax import lax
from jax.experimental import pallas as pl
from jax.experimental.pallas import tpu as pltpu


def upconv_phase_kernel(xp_ref, w_ref, o_ref, *, H, W, Cout, eps, neg_slope):
    """One batch sample per grid step.

    xp_ref: (1, H+2, W+2, Cin)  input, zero-padded by 1 (channels on lanes)
    w_ref : (4*Cout, 9*Cin)     phase-stacked "effective" conv weights
    o_ref : (1, 4, Cout, H*W)   per-phase, lane-dense output (H*W on lanes)
    """
    Cin = xp_ref.shape[-1]
    HW = H * W

    # ---- shared im2col of the original-resolution (zero-padded) input ------------
    cols = []
    for a in range(3):
        for b in range(3):
            patch = xp_ref[0, a:a + H, b:b + W, :]               # (H, W, Cin)
            cols.append(patch.reshape(HW, Cin))
    cols = jnp.concatenate(cols, axis=1).astype(jnp.float32)     # (HW, 9*Cin)

    # ---- all four upsample phases in a single MXU matmul --------------------------
    # (4*Cout, 9*Cin) x (9*Cin, HW); rhs contracts on its minor dim (like q.k^T).
    r = lax.dot_general(w_ref[...].astype(jnp.float32), cols,
                        dimension_numbers=(((1,), (1,)), ((), ())),
                        preferred_element_type=jnp.float32)      # (4*Cout, HW)

    # ---- InstanceNorm2d (affine=False): per-channel stats over all 4*HW pixels ----
    inv_n = 1.0 / (4.0 * HW)
    s1 = jnp.sum(r, axis=-1, keepdims=True)                      # (4*Cout, 1)
    s2 = jnp.sum(r * r, axis=-1, keepdims=True)                  # (4*Cout, 1)
    s1c = s1[0:Cout] + s1[Cout:2 * Cout] + s1[2 * Cout:3 * Cout] + s1[3 * Cout:4 * Cout]
    s2c = s2[0:Cout] + s2[Cout:2 * Cout] + s2[2 * Cout:3 * Cout] + s2[3 * Cout:4 * Cout]
    mean = s1c * inv_n
    var = s2c * inv_n - mean * mean
    scale = lax.rsqrt(var + eps)

    # ---- normalize + LeakyReLU(0.2), per phase (static 8-row aligned slices) ------
    for p in range(4):
        y = (r[p * Cout:(p + 1) * Cout, :] - mean) * scale
        y = jnp.where(y > 0, y, neg_slope * y)
        o_ref[0, p, :, :] = y.astype(o_ref.dtype)


def upconv2d_block(x_nchw, w_oihw, *, padding=1, stride=1):
    """Forward pass of UpConv2dBlock (norm='in', act='lrelu', zero pad, nearest 2x up).

    x_nchw: (N, Cin, H, W), w_oihw: (Cout, Cin, 3, 3)  ->  (N, Cout, 2H, 2W).
    """
    N, Cin, H, W = x_nchw.shape
    Cout, Cin_w, KH, KW = w_oihw.shape
    assert Cin_w == Cin
    assert stride == 1 and KH == 3 and KW == 3 and padding == 1, (
        "phase-decomposed kernel covers the 3x3 / stride 1 / padding 1 config")
    # TODO(synk): other kernel_size/padding combos, reflect/replicate pad, 'bn'/'sn'
    # norms and the skip-connection concat path (skip is None here) not implemented.

    Ho, Wo = 2 * H, 2 * W

    # ---- host-side layout plumbing (tiny, done once by XLA) -----------------------
    # input -> NHWC (channels on lanes), zero-padded by 1 -> no VMEM scratch needed
    xp = jnp.pad(jnp.transpose(x_nchw, (0, 2, 3, 1)),
                 ((0, 0), (1, 1), (1, 1), (0, 0)))
    # phase-collapsed effective weights: Keff[pr,pc] = M[pr] @ W3x3 @ M[pc]^T
    m = jnp.array([[[1., 0., 0.], [0., 1., 1.], [0., 0., 0.]],
                   [[0., 0., 0.], [1., 1., 0.], [0., 0., 1.]]], dtype=jnp.float32)
    keff = jnp.einsum('raA,ocAB,sbB->rsocab', m, w_oihw.astype(jnp.float32), m)
    wstk = jnp.transpose(keff, (0, 1, 2, 4, 5, 3)).reshape(4 * Cout, 9 * Cin)

    kernel = functools.partial(upconv_phase_kernel, H=H, W=W, Cout=Cout,
                               eps=1e-5, neg_slope=0.2)

    # TODO(synk): for large images tile H*W across a second grid axis with a
    # cross-tile reduction for the InstanceNorm statistics.
    out = pl.pallas_call(
        kernel,
        out_shape=jax.ShapeDtypeStruct((N, 4, Cout, H * W), x_nchw.dtype),
        grid_spec=pltpu.PrefetchScalarGridSpec(
            num_scalar_prefetch=0,
            grid=(N,),
            in_specs=[
                pl.BlockSpec((1, H + 2, W + 2, Cin), lambda n: (n, 0, 0, 0)),
                pl.BlockSpec((4 * Cout, 9 * Cin), lambda n: (0, 0)),
            ],
            out_specs=pl.BlockSpec((1, 4, Cout, H * W), lambda n: (n, 0, 0, 0)),
        ),
        compiler_params=pltpu.CompilerParams(
            dimension_semantics=("parallel",)),
    )(xp, wstk)

    # phase -> pixel interleave: (N,4,Cout,HW) -> (N,Cout,2H,2W). Pure layout, XLA-side.
    out = out.reshape(N, 2, 2, Cout, H, W).transpose(0, 3, 4, 1, 5, 2)
    return out.reshape(N, Cout, Ho, Wo)


def reference_forward(x_nchw, w_oihw, padding):
    """Pure-JAX reference mirroring the PyTorch module (default args)."""
    x_up = jnp.repeat(jnp.repeat(x_nchw, 2, axis=2), 2, axis=3)
    x_pad = jnp.pad(x_up, ((0, 0), (0, 0), (padding, padding), (padding, padding)))
    y = lax.conv_general_dilated(
        x_pad, w_oihw, window_strides=(1, 1), padding="VALID",
        dimension_numbers=("NCHW", "OIHW", "NCHW"),
    )
    mean = jnp.mean(y, axis=(2, 3), keepdims=True)
    var = jnp.var(y, axis=(2, 3), keepdims=True)
    y = (y - mean) / jnp.sqrt(var + 1e-5)
    return jnp.where(y > 0, y, 0.2 * y)


if __name__ == "__main__":
    key = jax.random.PRNGKey(0)
    k_x, k_w = jax.random.split(key)

    # UpConv2dBlock(input_dim=4, output_dim=8, kernel_size=3, stride=1, padding=1)
    N, Cin, H, W = 2, 4, 16, 16
    Cout, K, stride, padding = 8, 3, 1, 1

    x_nchw = jax.random.normal(k_x, (N, Cin, H, W), dtype=jnp.float32)
    w_oihw = jax.random.normal(k_w, (Cout, Cin, K, K), dtype=jnp.float32) * 0.1

    out_nchw = upconv2d_block(x_nchw, w_oihw, padding=padding, stride=stride)
    jax.block_until_ready(out_nchw)

    ref = reference_forward(x_nchw, w_oihw, padding)
    assert out_nchw.shape == (N, Cout, 2 * H, 2 * W)
    assert jnp.allclose(out_nchw, ref, atol=1e-2, rtol=1e-2), "mismatch vs reference"

    print("KERNEL_OK")
</pallas_src>

<mosaic_0001>
module attributes {stable_mosaic.version = 11 : i64} {
  func.func @upconv_phase_kernel(%arg0: i32, %arg1: memref<1x18x18x4xf32, #tpu.memory_space<vmem>>, %arg2: memref<32x36xf32, #tpu.memory_space<vmem>>, %arg3: memref<1x4x8x256xf32, #tpu.memory_space<vmem>>) attributes {dimension_semantics = [#tpu.dimension_semantics<parallel>], iteration_bounds = array<i64: 2>, scalar_prefetch = 0 : i64, scratch_operands = 0 : i64, tpu.core_type = #tpu.core_type<tc>, window_params = [{transform_indices = @transform_0, window_bounds = array<i64: 1, 18, 18, 4>}, {pipeline_mode = #tpu.pipeline_mode<synchronous>, transform_indices = @transform_1, window_bounds = array<i64: 32, 36>}, {transform_indices = @transform_2, window_bounds = array<i64: 1, 4, 8, 256>}]} {
    %c0 = arith.constant 0 : index
    %c0_0 = arith.constant 0 : index
    %c0_1 = arith.constant 0 : index
    %c0_2 = arith.constant 0 : index
    %0 = vector.load %arg1[%c0, %c0_0, %c0_1, %c0_2] : memref<1x18x18x4xf32, #tpu.memory_space<vmem>>, vector<1x16x16x4xf32>
    %1 = vector.shape_cast %0 : vector<1x16x16x4xf32> to vector<16x16x4xf32>
    %2 = vector.shape_cast %1 : vector<16x16x4xf32> to vector<256x4xf32>
    %c0_3 = arith.constant 0 : index
    %c0_4 = arith.constant 0 : index
    %c1 = arith.constant 1 : index
    %c0_5 = arith.constant 0 : index
    %3 = vector.load %arg1[%c0_3, %c0_4, %c1, %c0_5] : memref<1x18x18x4xf32, #tpu.memory_space<vmem>>, vector<1x16x16x4xf32>
    %4 = vector.shape_cast %3 : vector<1x16x16x4xf32> to vector<16x16x4xf32>
    %5 = vector.shape_cast %4 : vector<16x16x4xf32> to vector<256x4xf32>
    %c0_6 = arith.constant 0 : index
    %c0_7 = arith.constant 0 : index
    %c2 = arith.constant 2 : index
    %c0_8 = arith.constant 0 : index
    %6 = vector.load %arg1[%c0_6, %c0_7, %c2, %c0_8] : memref<1x18x18x4xf32, #tpu.memory_space<vmem>>, vector<1x16x16x4xf32>
    %7 = vector.shape_cast %6 : vector<1x16x16x4xf32> to vector<16x16x4xf32>
    %8 = vector.shape_cast %7 : vector<16x16x4xf32> to vector<256x4xf32>
    %c0_9 = arith.constant 0 : index
    %c1_10 = arith.constant 1 : index
    %c0_11 = arith.constant 0 : index
    %c0_12 = arith.constant 0 : index
    %9 = vector.load %arg1[%c0_9, %c1_10, %c0_11, %c0_12] : memref<1x18x18x4xf32, #tpu.memory_space<vmem>>, vector<1x16x16x4xf32>
    %10 = vector.shape_cast %9 : vector<1x16x16x4xf32> to vector<16x16x4xf32>
    %11 = vector.shape_cast %10 : vector<16x16x4xf32> to vector<256x4xf32>
    %c0_13 = arith.constant 0 : index
    %c1_14 = arith.constant 1 : index
    %c1_15 = arith.constant 1 : index
    %c0_16 = arith.constant 0 : index
    %12 = vector.load %arg1[%c0_13, %c1_14, %c1_15, %c0_16] : memref<1x18x18x4xf32, #tpu.memory_space<vmem>>, vector<1x16x16x4xf32>
    %13 = vector.shape_cast %12 : vector<1x16x16x4xf32> to vector<16x16x4xf32>
    %14 = vector.shape_cast %13 : vector<16x16x4xf32> to vector<256x4xf32>
    %c0_17 = arith.constant 0 : index
    %c1_18 = arith.constant 1 : index
    %c2_19 = arith.constant 2 : index
    %c0_20 = arith.constant 0 : index
    %15 = vector.load %arg1[%c0_17, %c1_18, %c2_19, %c0_20] : memref<1x18x18x4xf32, #tpu.memory_space<vmem>>, vector<1x16x16x4xf32>
    %16 = vector.shape_cast %15 : vector<1x16x16x4xf32> to vector<16x16x4xf32>
    %17 = vector.shape_cast %16 : vector<16x16x4xf32> to vector<256x4xf32>
    %c0_21 = arith.constant 0 : index
    %c2_22 = arith.constant 2 : index
    %c0_23 = arith.constant 0 : index
    %c0_24 = arith.constant 0 : index
    %18 = vector.load %arg1[%c0_21, %c2_22, %c0_23, %c0_24] : memref<1x18x18x4xf32, #tpu.memory_space<vmem>>, vector<1x16x16x4xf32>
    %19 = vector.shape_cast %18 : vector<1x16x16x4xf32> to vector<16x16x4xf32>
    %20 = vector.shape_cast %19 : vector<16x16x4xf32> to vector<256x4xf32>
    %c0_25 = arith.constant 0 : index
    %c2_26 = arith.constant 2 : index
    %c1_27 = arith.constant 1 : index
    %c0_28 = arith.constant 0 : index
    %21 = vector.load %arg1[%c0_25, %c2_26, %c1_27, %c0_28] : memref<1x18x18x4xf32, #tpu.memory_space<vmem>>, vector<1x16x16x4xf32>
    %22 = vector.shape_cast %21 : vector<1x16x16x4xf32> to vector<16x16x4xf32>
    %23 = vector.shape_cast %22 : vector<16x16x4xf32> to vector<256x4xf32>
    %c0_29 = arith.constant 0 : index
    %c2_30 = arith.constant 2 : index
    %c2_31 = arith.constant 2 : index
    %c0_32 = arith.constant 0 : index
    %24 = vector.load %arg1[%c0_29, %c2_30, %c2_31, %c0_32] : memref<1x18x18x4xf32, #tpu.memory_space<vmem>>, vector<1x16x16x4xf32>
    %25 = vector.shape_cast %24 : vector<1x16x16x4xf32> to vector<16x16x4xf32>
    %26 = vector.shape_cast %25 : vector<16x16x4xf32> to vector<256x4xf32>
    %27 = tpu.concatenate %2, %5, %8, %11, %14, %17, %20, %23, %26 in 1 : vector<256x4xf32>, vector<256x4xf32>, vector<256x4xf32>, vector<256x4xf32>, vector<256x4xf32>, vector<256x4xf32>, vector<256x4xf32>, vector<256x4xf32>, vector<256x4xf32> -> vector<256x36xf32>
    %c0_33 = arith.constant 0 : index
    %c0_34 = arith.constant 0 : index
    %28 = vector.load %arg2[%c0_33, %c0_34] : memref<32x36xf32, #tpu.memory_space<vmem>>, vector<32x36xf32>
    %cst = arith.constant dense<0.000000e+00> : vector<32x256xf32>
    %29 = tpu.matmul %28, %27, %cst {dimension_numbers = #tpu.dot_dimension_numbers<[1], [1], [0], [0], [0, 0, 1, 0], [], []>} : vector<32x36xf32>, vector<256x36xf32>, vector<32x256xf32> -> vector<32x256xf32>
    %cst_35 = arith.constant dense<0.000000e+00> : vector<32xf32>
    %30 = vector.multi_reduction <add>, %29, %cst_35 [1] : vector<32x256xf32> to vector<32xf32>
    %31 = vector.shape_cast %30 : vector<32xf32> to vector<32x1xf32>
    %32 = arith.mulf %29, %29 : vector<32x256xf32>
    %cst_36 = arith.constant dense<0.000000e+00> : vector<32xf32>
    %33 = vector.multi_reduction <add>, %32, %cst_36 [1] : vector<32x256xf32> to vector<32xf32>
    %34 = vector.shape_cast %33 : vector<32xf32> to vector<32x1xf32>
    %35 = vector.extract_strided_slice %31 {offsets = [0, 0], sizes = [8, 1], strides = [1, 1]} : vector<32x1xf32> to vector<8x1xf32>
    %36 = vector.extract_strided_slice %31 {offsets = [8, 0], sizes = [8, 1], strides = [1, 1]} : vector<32x1xf32> to vector<8x1xf32>
    %37 = arith.addf %35, %36 : vector<8x1xf32>
    %38 = vector.extract_strided_slice %31 {offsets = [16, 0], sizes = [8, 1], strides = [1, 1]} : vector<32x1xf32> to vector<8x1xf32>
    %39 = arith.addf %37, %38 : vector<8x1xf32>
    %40 = vector.extract_strided_slice %31 {offsets = [24, 0], sizes = [8, 1], strides = [1, 1]} : vector<32x1xf32> to vector<8x1xf32>
    %41 = arith.addf %39, %40 : vector<8x1xf32>
    %42 = vector.extract_strided_slice %34 {offsets = [0, 0], sizes = [8, 1], strides = [1, 1]} : vector<32x1xf32> to vector<8x1xf32>
    %43 = vector.extract_strided_slice %34 {offsets = [8, 0], sizes = [8, 1], strides = [1, 1]} : vector<32x1xf32> to vector<8x1xf32>
    %44 = arith.addf %42, %43 : vector<8x1xf32>
    %45 = vector.extract_strided_slice %34 {offsets = [16, 0], sizes = [8, 1], strides = [1, 1]} : vector<32x1xf32> to vector<8x1xf32>
    %46 = arith.addf %44, %45 : vector<8x1xf32>
    %47 = vector.extract_strided_slice %34 {offsets = [24, 0], sizes = [8, 1], strides = [1, 1]} : vector<32x1xf32> to vector<8x1xf32>
    %48 = arith.addf %46, %47 : vector<8x1xf32>
    %cst_37 = arith.constant 9.765625E-4 : f32
    %49 = vector.broadcast %cst_37 : f32 to vector<8x1xf32>
    %50 = arith.mulf %41, %49 : vector<8x1xf32>
    %cst_38 = arith.constant 9.765625E-4 : f32
    %51 = vector.broadcast %cst_38 : f32 to vector<8x1xf32>
    %52 = arith.mulf %48, %51 : vector<8x1xf32>
    %53 = arith.mulf %50, %50 : vector<8x1xf32>
    %54 = arith.subf %52, %53 : vector<8x1xf32>
    %cst_39 = arith.constant 9.99999974E-6 : f32
    %55 = vector.broadcast %cst_39 : f32 to vector<8x1xf32>
    %56 = arith.addf %54, %55 : vector<8x1xf32>
    %57 = math.rsqrt %56 : vector<8x1xf32>
    %58 = vector.extract_strided_slice %29 {offsets = [0, 0], sizes = [8, 256], strides = [1, 1]} : vector<32x256xf32> to vector<8x256xf32>
    %59 = vector.broadcast %50 : vector<8x1xf32> to vector<8x256xf32>
    %60 = arith.subf %58, %59 : vector<8x256xf32>
    %61 = vector.broadcast %57 : vector<8x1xf32> to vector<8x256xf32>
    %62 = arith.mulf %60, %61 : vector<8x256xf32>
    %cst_40 = arith.constant 0.000000e+00 : f32
    %63 = vector.broadcast %cst_40 : f32 to vector<8x256xf32>
    %64 = arith.cmpf ogt, %62, %63 : vector<8x256xf32>
    %cst_41 = arith.constant 2.000000e-01 : f32
    %65 = vector.broadcast %cst_41 : f32 to vector<8x256xf32>
    %66 = arith.mulf %65, %62 : vector<8x256xf32>
    %67 = arith.select %64, %62, %66 : vector<8x256xi1>, vector<8x256xf32>
    %c0_42 = arith.constant 0 : index
    %c0_43 = arith.constant 0 : index
    %c0_44 = arith.constant 0 : index
    %c0_45 = arith.constant 0 : index
    %68 = vector.load %arg3[%c0_42, %c0_43, %c0_44, %c0_45] : memref<1x4x8x256xf32, #tpu.memory_space<vmem>>, vector<1x1x8x256xf32>
    %69 = vector.shape_cast %68 : vector<1x1x8x256xf32> to vector<8x256xf32>
    %70 = vector.shape_cast %67 : vector<8x256xf32> to vector<1x1x8x256xf32>
    tpu.vector_store %arg3[%c0_42, %c0_43, %c0_44, %c0_45], %70 {strides = array<i32>} : memref<1x4x8x256xf32, #tpu.memory_space<vmem>>, vector<1x1x8x256xf32>,
    %71 = vector.extract_strided_slice %29 {offsets = [8, 0], sizes = [8, 256], strides = [1, 1]} : vector<32x256xf32> to vector<8x256xf32>
    %72 = vector.broadcast %50 : vector<8x1xf32> to vector<8x256xf32>
    %73 = arith.subf %71, %72 : vector<8x256xf32>
    %74 = vector.broadcast %57 : vector<8x1xf32> to vector<8x256xf32>
    %75 = arith.mulf %73, %74 : vector<8x256xf32>
    %cst_46 = arith.constant 0.000000e+00 : f32
    %76 = vector.broadcast %cst_46 : f32 to vector<8x256xf32>
    %77 = arith.cmpf ogt, %75, %76 : vector<8x256xf32>
    %cst_47 = arith.constant 2.000000e-01 : f32
    %78 = vector.broadcast %cst_47 : f32 to vector<8x256xf32>
    %79 = arith.mulf %78, %75 : vector<8x256xf32>
    %80 = arith.select %77, %75, %79 : vector<8x256xi1>, vector<8x256xf32>
    %c0_48 = arith.constant 0 : index
    %c1_49 = arith.constant 1 : index
    %c0_50 = arith.constant 0 : index
    %c0_51 = arith.constant 0 : index
    %81 = vector.load %arg3[%c0_48, %c1_49, %c0_50, %c0_51] : memref<1x4x8x256xf32, #tpu.memory_space<vmem>>, vector<1x1x8x256xf32>
    %82 = vector.shape_cast %81 : vector<1x1x8x256xf32> to vector<8x256xf32>
    %83 = vector.shape_cast %80 : vector<8x256xf32> to vector<1x1x8x256xf32>
    tpu.vector_store %arg3[%c0_48, %c1_49, %c0_50, %c0_51], %83 {strides = array<i32>} : memref<1x4x8x256xf32, #tpu.memory_space<vmem>>, vector<1x1x8x256xf32>,
    %84 = vector.extract_strided_slice %29 {offsets = [16, 0], sizes = [8, 256], strides = [1, 1]} : vector<32x256xf32> to vector<8x256xf32>
    %85 = vector.broadcast %50 : vector<8x1xf32> to vector<8x256xf32>
    %86 = arith.subf %84, %85 : vector<8x256xf32>
    %87 = vector.broadcast %57 : vector<8x1xf32> to vector<8x256xf32>
    %88 = arith.mulf %86, %87 : vector<8x256xf32>
    %cst_52 = arith.constant 0.000000e+00 : f32
    %89 = vector.broadcast %cst_52 : f32 to vector<8x256xf32>
    %90 = arith.cmpf ogt, %88, %89 : vector<8x256xf32>
    %cst_53 = arith.constant 2.000000e-01 : f32
    %91 = vector.broadcast %cst_53 : f32 to vector<8x256xf32>
    %92 = arith.mulf %91, %88 : vector<8x256xf32>
    %93 = arith.select %90, %88, %92 : vector<8x256xi1>, vector<8x256xf32>
    %c0_54 = arith.constant 0 : index
    %c2_55 = arith.constant 2 : index
    %c0_56 = arith.constant 0 : index
    %c0_57 = arith.constant 0 : index
    %94 = vector.load %arg3[%c0_54, %c2_55, %c0_56, %c0_57] : memref<1x4x8x256xf32, #tpu.memory_space<vmem>>, vector<1x1x8x256xf32>
    %95 = vector.shape_cast %94 : vector<1x1x8x256xf32> to vector<8x256xf32>
    %96 = vector.shape_cast %93 : vector<8x256xf32> to vector<1x1x8x256xf32>
    tpu.vector_store %arg3[%c0_54, %c2_55, %c0_56, %c0_57], %96 {strides = array<i32>} : memref<1x4x8x256xf32, #tpu.memory_space<vmem>>, vector<1x1x8x256xf32>,
    %97 = vector.extract_strided_slice %29 {offsets = [24, 0], sizes = [8, 256], strides = [1, 1]} : vector<32x256xf32> to vector<8x256xf32>
    %98 = vector.broadcast %50 : vector<8x1xf32> to vector<8x256xf32>
    %99 = arith.subf %97, %98 : vector<8x256xf32>
    %100 = vector.broadcast %57 : vector<8x1xf32> to vector<8x256xf32>
    %101 = arith.mulf %99, %100 : vector<8x256xf32>
    %cst_58 = arith.constant 0.000000e+00 : f32
    %102 = vector.broadcast %cst_58 : f32 to vector<8x256xf32>
    %103 = arith.cmpf ogt, %101, %102 : vector<8x256xf32>
    %cst_59 = arith.constant 2.000000e-01 : f32
    %104 = vector.broadcast %cst_59 : f32 to vector<8x256xf32>
    %105 = arith.mulf %104, %101 : vector<8x256xf32>
    %106 = arith.select %103, %101, %105 : vector<8x256xi1>, vector<8x256xf32>
    %c0_60 = arith.constant 0 : index
    %c3 = arith.constant 3 : index
    %c0_61 = arith.constant 0 : index
    %c0_62 = arith.constant 0 : index
    %107 = vector.load %arg3[%c0_60, %c3, %c0_61, %c0_62] : memref<1x4x8x256xf32, #tpu.memory_space<vmem>>, vector<1x1x8x256xf32>
    %108 = vector.shape_cast %107 : vector<1x1x8x256xf32> to vector<8x256xf32>
    %109 = vector.shape_cast %106 : vector<8x256xf32> to vector<1x1x8x256xf32>
    tpu.vector_store %arg3[%c0_60, %c3, %c0_61, %c0_62], %109 {strides = array<i32>} : memref<1x4x8x256xf32, #tpu.memory_space<vmem>>, vector<1x1x8x256xf32>,
    return
  }
  func.func @transform_0(%arg0: i32) -> (i32, i32, i32, i32) {
    %c0_i32 = arith.constant 0 : i32
    %c0_i32_0 = arith.constant 0 : i32
    %c0_i32_1 = arith.constant 0 : i32
    %c0_i32_2 = arith.constant 0 : i32
    return %arg0, %c0_i32, %c0_i32_0, %c0_i32_1 : i32, i32, i32, i32
  }
  func.func @transform_1(%arg0: i32) -> (i32, i32) {
    %c0_i32 = arith.constant 0 : i32
    %c0_i32_0 = arith.constant 0 : i32
    %c0_i32_1 = arith.constant 0 : i32
    return %c0_i32, %c0_i32_0 : i32, i32
  }
  func.func @transform_2(%arg0: i32) -> (i32, i32, i32, i32) {
    %c0_i32 = arith.constant 0 : i32
    %c0_i32_0 = arith.constant 0 : i32
    %c0_i32_1 = arith.constant 0 : i32
    %c0_i32_2 = arith.constant 0 : i32
    return %arg0, %c0_i32, %c0_i32_0, %c0_i32_1 : i32, i32, i32, i32
  }
}

</mosaic_0001>

<llo_original>
// kernel: tpu_custom_call.1
$region0: #{tpu_custom_call.1}
  #allocation0 [shape = 'u32[]', space=smem, size = 0x4, offset = 0x4, fixed_abs, tag = 'smem constant byte address 0x4 - core index']
  #allocation1 [shape = 'u32[144,128]{1,0:T(1,128)}', space=vmem, size = 0x12000, scoped, tag = 'internal scratch']
  %s0 = inlined_call_operand.vmem [shape: f32[2,18,18,4], index: 0, kind: input, shape index: {}]
  %s1 = inlined_call_operand.vmem [shape: f32[32,36], index: 1, kind: input, shape index: {}]
  %s2 = inlined_call_operand.hbm [shape: f32[2,4,8,256], index: 2, kind: output, shape index: {}]
  %s3 = sld [smem:[#allocation0]]
  $region41: #{tpu_custom_call.1} parent=0
    _
  %s5 = ssub.s32 1, %s3
  %s6 = scalar_select 0, %s5, %s3
  $region1: #{tpu_custom_call.1} parent=0
    #allocation2 [shape = 'u8[65536]{0}', space=vmem, size = 0x10000, scoped, tag = 'output window, operand 0']
    #allocation3 [shape = 's32[2]{0}', space=sflag, size = 0x8, scoped, tag = 'scoped memory for tpu_custom_call.1']
    %7 = vsyncpa [#allocation3], 0
    %s8 = scalar_lea.sflag [#allocation3], 1
    %9 = vsyncpa %s8, 0
    loop: start=0, step=1, limit=4
    $region2: #{tpu_custom_call.1} parent=1 // loop_pre_header
      _
    $region3: #{tpu_custom_call.1} parent=1 // loop_header
      %s11 = sphi 0, %s15
      %p12 = scmp.ge.s32.totalorder %s11, 4
      %s21 = sphi 0, %s23
      %s24 = sphi 0, %s21
      %s25 = sphi 0, %s24
      %s41 = sphi 0, %s25
      %s45 = sphi 0, %s45
      %s47 = sphi 0, %s45
      %s48 = sphi 0, %s47
      %s62 = sphi 0, %s48
      %s68 = sphi 0, %s70
      %s71 = sphi 0, %s68
      %s72 = sphi 0, %s71
      %s88 = sphi 0, %s72
    $region4: #{tpu_custom_call.1} parent=1 // loop_header_branch
      %14 = sbr.rel (%p12) target = $region8
    $region5: #{tpu_custom_call.1} parent=1 // loop_body
      %s16 = ssub.s32 %s11, 1
      %s17 = ssub.s32 %s11, 2
      %s18 = sadd.s32 %s11, 1
      %s19 = ssub.s32 %s11, %s18
      %p20 = scmp.eq.s32.totalorder %s19, 0
      %s22 = sadd.s32 %s21, 1
      %s23 = scalar_select %p20, %s21, %s22
      %p26 = pneg %p20
      %p27 = scmp.eq.s32.totalorder %s11, 1
      %p28 = por %p26, %p27
      %p29 = scmp.ne.s32.totalorder %s21, %s24
      %p30 = scmp.eq.s32.totalorder %s11, 0
      %p31 = por %p29, %p30
      %p32 = scmp.ne.s32.totalorder %s21, %s24
      %p33 = scmp.eq.s32.totalorder %s16, 1
      %p34 = por %p32, %p33
      %p35 = scmp.ne.s32.totalorder %s24, %s25
      %p36 = scmp.eq.s32.totalorder %s16, 0
      %p37 = por %p35, %p36
      %p38 = scmp.ne.s32.totalorder %s24, %s25
      %p39 = scmp.eq.s32.totalorder %s17, 1
      %p40 = por %p38, %p39
      %p42 = scmp.ne.s32.totalorder %s25, %s41
      %p43 = scmp.eq.s32.totalorder %s17, 0
      %p44 = por %p42, %p43
      %s46 = sadd.s32 %s45, 1
      %p49 = scmp.eq.s32.totalorder %s11, 1
      %p50 = scmp.ne.s32.totalorder %s45, %s47
      %p51 = scmp.eq.s32.totalorder %s11, 0
      %p52 = por %p50, %p51
      %p53 = scmp.ne.s32.totalorder %s45, %s47
      %p54 = scmp.eq.s32.totalorder %s16, 1
      %p55 = por %p53, %p54
      %p56 = scmp.ne.s32.totalorder %s47, %s48
      %p57 = scmp.eq.s32.totalorder %s16, 0
      %p58 = por %p56, %p57
      %p59 = scmp.ne.s32.totalorder %s47, %s48
      %p60 = scmp.eq.s32.totalorder %s17, 1
      %p61 = por %p59, %p60
      %p63 = scmp.ne.s32.totalorder %s48, %s62
      %p64 = scmp.eq.s32.totalorder %s17, 0
      %p65 = por %p63, %p64
      %s66 = ssub.s32 %s11, %s18
      %p67 = scmp.eq.s32.totalorder %s66, 0
      %s69 = sadd.s32 %s68, 1
      %s70 = scalar_select %p67, %s68, %s69
      %p73 = pneg %p67
      %p74 = scmp.eq.s32.totalorder %s11, 1
      %p75 = por %p73, %p74
      %p76 = scmp.ne.s32.totalorder %s68, %s71
      %p77 = scmp.eq.s32.totalorder %s11, 0
      %p78 = por %p76, %p77
      %p79 = scmp.ne.s32.totalorder %s68, %s71
      %p80 = scmp.eq.s32.totalorder %s16, 1
      %p81 = por %p79, %p80
      %p82 = scmp.ne.s32.totalorder %s71, %s72
      %p83 = scmp.eq.s32.totalorder %s16, 0
      %p84 = por %p82, %p83
      %p85 = scmp.ne.s32.totalorder %s71, %s72
      %p86 = scmp.eq.s32.totalorder %s17, 1
      %p87 = por %p85, %p86
      %p89 = scmp.ne.s32.totalorder %s72, %s88
      %p90 = scmp.eq.s32.totalorder %s17, 0
      %p91 = por %p89, %p90
      %p92 = scmp.le.s32.totalorder 1, %s11
      %p93 = scmp.lt.s32.totalorder %s11, 3
      %p94 = pnand %p92, %p93
      %p95 = pneg %p94
      // Predicated region
      $region9: #{tpu_custom_call.1} parent=5 // pred_check
        _
      $region10: #{tpu_custom_call.1} parent=5 // pred_check_branch
        %97 = sbr.rel (%p94) target = $region12
      $region11: #{tpu_custom_call.1} parent=5 // pred_region
        %s98 = ssub.s32 %s11, 1
        // Predicated region
        $region13: #{tpu_custom_call.1} parent=11 // pred_check
          %p99 = pneg %p58
        $region14: #{tpu_custom_call.1} parent=11 // pred_check_branch
          %101 = sbr.rel (%p99) target = $region16
        $region15: #{tpu_custom_call.1} parent=11 // pred_region
          _
        $region16: #{tpu_custom_call.1} parent=11 // pred_fallthru
          _
      $region12: #{tpu_custom_call.1} parent=5 // pred_fallthru
        _
      %p102 = scmp.lt.s32.totalorder %s11, 2
      // Predicated region
      $region17: #{tpu_custom_call.1} parent=5 // pred_check
        %p103 = pneg %p102
      $region18: #{tpu_custom_call.1} parent=5 // pred_check_branch
        %105 = sbr.rel (%p103) target = $region20
      $region19: #{tpu_custom_call.1} parent=5 // pred_region
        // Predicated region
        $region21: #{tpu_custom_call.1} parent=19 // pred_check
          %p106 = pneg %p31
        $region22: #{tpu_custom_call.1} parent=19 // pred_check_branch
          %108 = sbr.rel (%p106) target = $region24
        $region23: #{tpu_custom_call.1} parent=19 // pred_region
          %p109 = scmp.lt.s32.totalorder %s11, 1
          %s110 = scalar_select %p109, %s11, 1
          %s111 = smul.addr %s110, 54
          %s112 = smul.addr %s111, 8
          %s113 = scalar_lea.vmem %s0, %s112
        $region24: #{tpu_custom_call.1} parent=19 // pred_fallthru
          _
      $region20: #{tpu_custom_call.1} parent=5 // pred_fallthru
        _
      %p114 = scmp.le.s32.totalorder 1, %s11
      %p115 = scmp.lt.s32.totalorder %s11, 3
      %p116 = pnand %p114, %p115
      %p117 = pneg %p116
      // Predicated region
      $region25: #{tpu_custom_call.1} parent=5 // pred_check
        _
      $region26: #{tpu_custom_call.1} parent=5 // pred_check_branch
        %119 = sbr.rel (%p116) target = $region28
      $region27: #{tpu_custom_call.1} parent=5 // pred_region
        %s120 = ssub.s32 %s11, 1
        %p121 = scmp.lt.s32.totalorder %s16, 1
        %s122 = scalar_select %p121, %s16, 1
        %s123 = smul.addr %s122, 54
        %s124 = smul.addr %s123, 8
        %s125 = scalar_lea.vmem %s0, %s124
        %p126 = pneg %p37
        %p127 = pneg %p34
        %p128 = pneg %p58
        %p129 = pneg %p55
        %p130 = pneg %p84
        %p131 = pneg %p81
        %s132 = sand.u32 %s71, 1
        %s133 = scalar_lea.sflag [#allocation3], %s132
        %s134 = sand.u32 %s71, 1
        %s135 = smul.addr %s134, 64
        %s136 = scalar_lea.vmem [#allocation2], %s135
        %p137 = scmp.lt.s32.totalorder %s16, 1
        %s138 = scalar_select %p137, %s16, 1
        %s139 = smul.addr %s138, 54
        %s140 = smul.addr %s139, 8
        %s141 = scalar_lea.vmem %s0, %s140
        %v142 = vld [vmem:[%s141] sm:$0xff]
        %v143 = vld [vmem:[%s141 + $0x8] sm:$0xff]
        %v144 = vld [vmem:[%s141 + $0x18] sm:$0xff]
        %v145 = vld [vmem:[%s141 + $0x20] sm:$0xff]
        %v146 = vld [vmem:[%s141 + $0x30] sm:$0xff]
        %v147 = vld [vmem:[%s141 + $0x38] sm:$0xff]
        %v148 = vld [vmem:[%s141 + $0x48] sm:$0xff]
        %v149 = vld [vmem:[%s141 + $0x50] sm:$0xff]
        %v150 = vld [vmem:[%s141 + $0x60] sm:$0xff]
        %v151 = vld [vmem:[%s141 + $0x68] sm:$0xff]
        %v152 = vld [vmem:[%s141 + $0x78] sm:$0xff]
        %v153 = vld [vmem:[%s141 + $0x80] sm:$0xff]
        %v154 = vld [vmem:[%s141 + $0x90] sm:$0xff]
        %v155 = vld [vmem:[%s141 + $0x98] sm:$0xff]
        %v156 = vld [vmem:[%s141 + $0xa8] sm:$0xff]
        %v157 = vld [vmem:[%s141 + $0xb0] sm:$0xff]
        %v158 = vld [vmem:[%s141 + $0xc0] sm:$0xff]
        %v159 = vld [vmem:[%s141 + $0xc8] sm:$0xff]
        %v160 = vld [vmem:[%s141 + $0xd8] sm:$0xff]
        %v161 = vld [vmem:[%s141 + $0xe0] sm:$0xff]
        %v162 = vld [vmem:[%s141 + $0xf0] sm:$0xff]
        %v163 = vld [vmem:[%s141 + $0xf8] sm:$0xff]
        %v164 = vld [vmem:[%s141 + $0x108] sm:$0xff]
        %v165 = vld [vmem:[%s141 + $0x110] sm:$0xff]
        %v166 = vld [vmem:[%s141 + $0x120] sm:$0xff]
        %v167 = vld [vmem:[%s141 + $0x128] sm:$0xff]
        %v168 = vld [vmem:[%s141 + $0x138] sm:$0xff]
        %v169 = vld [vmem:[%s141 + $0x140] sm:$0xff]
        %v170 = vld [vmem:[%s141 + $0x150] sm:$0xff]
        %v171 = vld [vmem:[%s141 + $0x158] sm:$0xff]
        %v172 = vld [vmem:[%s141 + $0x168] sm:$0xff]
        %v173 = vld [vmem:[%s141 + $0x170] sm:$0xff]
        %v174 = vld [vmem:[%s141 + $0x1] sm:$0xff]
        %v175 = vld [vmem:[%s141 + $0x9] sm:$0xff]
        %v176 = vld [vmem:[%s141 + $0x19] sm:$0xff]
        %v177 = vld [vmem:[%s141 + $0x21] sm:$0xff]
        %v178 = vld [vmem:[%s141 + $0x31] sm:$0xff]
        %v179 = vld [vmem:[%s141 + $0x39] sm:$0xff]
        %v180 = vld [vmem:[%s141 + $0x49] sm:$0xff]
        %v181 = vld [vmem:[%s141 + $0x51] sm:$0xff]
        %v182 = vld [vmem:[%s141 + $0x61] sm:$0xff]
        %v183 = vld [vmem:[%s141 + $0x69] sm:$0xff]
        %v184 = vld [vmem:[%s141 + $0x79] sm:$0xff]
        %v185 = vld [vmem:[%s141 + $0x81] sm:$0xff]
        %v186 = vld [vmem:[%s141 + $0x91] sm:$0xff]
        %v187 = vld [vmem:[%s141 + $0x99] sm:$0xff]
        %v188 = vld [vmem:[%s141 + $0xa9] sm:$0xff]
        %v189 = vld [vmem:[%s141 + $0xb1] sm:$0xff]
        %v190 = vld [vmem:[%s141 + $0xc1] sm:$0xff]
        %v191 = vld [vmem:[%s141 + $0xc9] sm:$0xff]
        %v192 = vld [vmem:[%s141 + $0xd9] sm:$0xff]
        %v193 = vld [vmem:[%s141 + $0xe1] sm:$0xff]
        %v194 = vld [vmem:[%s141 + $0xf1] sm:$0xff]
        %v195 = vld [vmem:[%s141 + $0xf9] sm:$0xff]
        %v196 = vld [vmem:[%s141 + $0x109] sm:$0xff]
        %v197 = vld [vmem:[%s141 + $0x111] sm:$0xff]
        %v198 = vld [vmem:[%s141 + $0x121] sm:$0xff]
        %v199 = vld [vmem:[%s141 + $0x129] sm:$0xff]
        %v200 = vld [vmem:[%s141 + $0x139] sm:$0xff]
        %v201 = vld [vmem:[%s141 + $0x141] sm:$0xff]
        %v202 = vld [vmem:[%s141 + $0x151] sm:$0xff]
        %v203 = vld [vmem:[%s141 + $0x159] sm:$0xff]
        %v204 = vld [vmem:[%s141 + $0x169] sm:$0xff]
        %v205 = vld [vmem:[%s141 + $0x171] sm:$0xff]
        %v206 = vld [vmem:[%s141 + $0x2] sm:$0xff]
        %v207 = vld [vmem:[%s141 + $0xa] sm:$0xff]
        %v208 = vld [vmem:[%s141 + $0x1a] sm:$0xff]
        %v209 = vld [vmem:[%s141 + $0x22] sm:$0xff]
        %v210 = vld [vmem:[%s141 + $0x32] sm:$0xff]
        %v211 = vld [vmem:[%s141 + $0x3a] sm:$0xff]
        %v212 = vld [vmem:[%s141 + $0x4a] sm:$0xff]
        %v213 = vld [vmem:[%s141 + $0x52] sm:$0xff]
        %v214 = vld [vmem:[%s141 + $0x62] sm:$0xff]
        %v215 = vld [vmem:[%s141 + $0x6a] sm:$0xff]
        %v216 = vld [vmem:[%s141 + $0x7a] sm:$0xff]
        %v217 = vld [vmem:[%s141 + $0x82] sm:$0xff]
        %v218 = vld [vmem:[%s141 + $0x92] sm:$0xff]
        %v219 = vld [vmem:[%s141 + $0x9a] sm:$0xff]
        %v220 = vld [vmem:[%s141 + $0xaa] sm:$0xff]
        %v221 = vld [vmem:[%s141 + $0xb2] sm:$0xff]
        %v222 = vld [vmem:[%s141 + $0xc2] sm:$0xff]
        %v223 = vld [vmem:[%s141 + $0xca] sm:$0xff]
        %v224 = vld [vmem:[%s141 + $0xda] sm:$0xff]
        %v225 = vld [vmem:[%s141 + $0xe2] sm:$0xff]
        %v226 = vld [vmem:[%s141 + $0xf2] sm:$0xff]
        %v227 = vld [vmem:[%s141 + $0xfa] sm:$0xff]
        %v228 = vld [vmem:[%s141 + $0x10a] sm:$0xff]
        %v229 = vld [vmem:[%s141 + $0x112] sm:$0xff]
        %v230 = vld [vmem:[%s141 + $0x122] sm:$0xff]
        %v231 = vld [vmem:[%s141 + $0x12a] sm:$0xff]
        %v232 = vld [vmem:[%s141 + $0x13a] sm:$0xff]
        %v233 = vld [vmem:[%s141 + $0x142] sm:$0xff]
        %v234 = vld [vmem:[%s141 + $0x152] sm:$0xff]
        %v235 = vld [vmem:[%s141 + $0x15a] sm:$0xff]
        %v236 = vld [vmem:[%s141 + $0x16a] sm:$0xff]
        %v237 = vld [vmem:[%s141 + $0x172] sm:$0xff]
        %s238 = scalar_lea.vmem %s141, 24
        %v239 = vld [vmem:[%s238] sm:$0xff]
        %v240 = vld [vmem:[%s238 + $0x8] sm:$0xff]
        %v241 = vld [vmem:[%s238 + $0x18] sm:$0xff]
        %v242 = vld [vmem:[%s238 + $0x20] sm:$0xff]
        %v243 = vld [vmem:[%s238 + $0x30] sm:$0xff]
        %v244 = vld [vmem:[%s238 + $0x38] sm:$0xff]
        %v245 = vld [vmem:[%s238 + $0x48] sm:$0xff]
        %v246 = vld [vmem:[%s238 + $0x50] sm:$0xff]
        %v247 = vld [vmem:[%s238 + $0x60] sm:$0xff]
        %v248 = vld [vmem:[%s238 + $0x68] sm:$0xff]
        %v249 = vld [vmem:[%s238 + $0x78] sm:$0xff]
        %v250 = vld [vmem:[%s238 + $0x80] sm:$0xff]
        %v251 = vld [vmem:[%s238 + $0x90] sm:$0xff]
        %v252 = vld [vmem:[%s238 + $0x98] sm:$0xff]
        %v253 = vld [vmem:[%s238 + $0xa8] sm:$0xff]
        %v254 = vld [vmem:[%s238 + $0xb0] sm:$0xff]
        %v255 = vld [vmem:[%s238 + $0xc0] sm:$0xff]
        %v256 = vld [vmem:[%s238 + $0xc8] sm:$0xff]
        %v257 = vld [vmem:[%s238 + $0xd8] sm:$0xff]
        %v258 = vld [vmem:[%s238 + $0xe0] sm:$0xff]
        %v259 = vld [vmem:[%s238 + $0xf0] sm:$0xff]
        %v260 = vld [vmem:[%s238 + $0xf8] sm:$0xff]
        %v261 = vld [vmem:[%s238 + $0x108] sm:$0xff]
        %v262 = vld [vmem:[%s238 + $0x110] sm:$0xff]
        %v263 = vld [vmem:[%s238 + $0x120] sm:$0xff]
        %v264 = vld [vmem:[%s238 + $0x128] sm:$0xff]
        %v265 = vld [vmem:[%s238 + $0x138] sm:$0xff]
        %v266 = vld [vmem:[%s238 + $0x140] sm:$0xff]
        %v267 = vld [vmem:[%s238 + $0x150] sm:$0xff]
        %v268 = vld [vmem:[%s238 + $0x158] sm:$0xff]
        %v269 = vld [vmem:[%s238 + $0x168] sm:$0xff]
        %v270 = vld [vmem:[%s238 + $0x170] sm:$0xff]
        %v271 = vld [vmem:[%s238 + $0x1] sm:$0xff]
        %v272 = vld [vmem:[%s238 + $0x9] sm:$0xff]
        %v273 = vld [vmem:[%s238 + $0x19] sm:$0xff]
        %v274 = vld [vmem:[%s238 + $0x21] sm:$0xff]
        %v275 = vld [vmem:[%s238 + $0x31] sm:$0xff]
        %v276 = vld [vmem:[%s238 + $0x39] sm:$0xff]
        %v277 = vld [vmem:[%s238 + $0x49] sm:$0xff]
        %v278 = vld [vmem:[%s238 + $0x51] sm:$0xff]
        %v279 = vld [vmem:[%s238 + $0x61] sm:$0xff]
        %v280 = vld [vmem:[%s238 + $0x69] sm:$0xff]
        %v281 = vld [vmem:[%s238 + $0x79] sm:$0xff]
        %v282 = vld [vmem:[%s238 + $0x81] sm:$0xff]
        %v283 = vld [vmem:[%s238 + $0x91] sm:$0xff]
        %v284 = vld [vmem:[%s238 + $0x99] sm:$0xff]
        %v285 = vld [vmem:[%s238 + $0xa9] sm:$0xff]
        %v286 = vld [vmem:[%s238 + $0xb1] sm:$0xff]
        %v287 = vld [vmem:[%s238 + $0xc1] sm:$0xff]
        %v288 = vld [vmem:[%s238 + $0xc9] sm:$0xff]
        %v289 = vld [vmem:[%s238 + $0xd9] sm:$0xff]
        %v290 = vld [vmem:[%s238 + $0xe1] sm:$0xff]
        %v291 = vld [vmem:[%s238 + $0xf1] sm:$0xff]
        %v292 = vld [vmem:[%s238 + $0xf9] sm:$0xff]
        %v293 = vld [vmem:[%s238 + $0x109] sm:$0xff]
        %v294 = vld [vmem:[%s238 + $0x111] sm:$0xff]
        %v295 = vld [vmem:[%s238 + $0x121] sm:$0xff]
        %v296 = vld [vmem:[%s238 + $0x129] sm:$0xff]
        %v297 = vld [vmem:[%s238 + $0x139] sm:$0xff]
        %v298 = vld [vmem:[%s238 + $0x141] sm:$0xff]
        %v299 = vld [vmem:[%s238 + $0x151] sm:$0xff]
        %v300 = vld [vmem:[%s238 + $0x159] sm:$0xff]
        %v301 = vld [vmem:[%s238 + $0x169] sm:$0xff]
        %v302 = vld [vmem:[%s238 + $0x171] sm:$0xff]
        %v303 = vld [vmem:[%s238 + $0x2] sm:$0xff]
        %v304 = vld [vmem:[%s238 + $0xa] sm:$0xff]
        %v305 = vld [vmem:[%s238 + $0x1a] sm:$0xff]
        %v306 = vld [vmem:[%s238 + $0x22] sm:$0xff]
        %v307 = vld [vmem:[%s238 + $0x32] sm:$0xff]
        %v308 = vld [vmem:[%s238 + $0x3a] sm:$0xff]
        %v309 = vld [vmem:[%s238 + $0x4a] sm:$0xff]
        %v310 = vld [vmem:[%s238 + $0x52] sm:$0xff]
        %v311 = vld [vmem:[%s238 + $0x62] sm:$0xff]
        %v312 = vld [vmem:[%s238 + $0x6a] sm:$0xff]
        %v313 = vld [vmem:[%s238 + $0x7a] sm:$0xff]
        %v314 = vld [vmem:[%s238 + $0x82] sm:$0xff]
        %v315 = vld [vmem:[%s238 + $0x92] sm:$0xff]
        %v316 = vld [vmem:[%s238 + $0x9a] sm:$0xff]
        %v317 = vld [vmem:[%s238 + $0xaa] sm:$0xff]
        %v318 = vld [vmem:[%s238 + $0xb2] sm:$0xff]
        %v319 = vld [vmem:[%s238 + $0xc2] sm:$0xff]
        %v320 = vld [vmem:[%s238 + $0xca] sm:$0xff]
        %v321 = vld [vmem:[%s238 + $0xda] sm:$0xff]
        %v322 = vld [vmem:[%s238 + $0xe2] sm:$0xff]
        %v323 = vld [vmem:[%s238 + $0xf2] sm:$0xff]
        %v324 = vld [vmem:[%s238 + $0xfa] sm:$0xff]
        %v325 = vld [vmem:[%s238 + $0x10a] sm:$0xff]
        %v326 = vld [vmem:[%s238 + $0x112] sm:$0xff]
        %v327 = vld [vmem:[%s238 + $0x122] sm:$0xff]
        %v328 = vld [vmem:[%s238 + $0x12a] sm:$0xff]
        %v329 = vld [vmem:[%s238 + $0x13a] sm:$0xff]
        %v330 = vld [vmem:[%s238 + $0x142] sm:$0xff]
        %v331 = vld [vmem:[%s238 + $0x152] sm:$0xff]
        %v332 = vld [vmem:[%s238 + $0x15a] sm:$0xff]
        %v333 = vld [vmem:[%s238 + $0x16a] sm:$0xff]
        %v334 = vld [vmem:[%s238 + $0x172] sm:$0xff]
        %s335 = scalar_lea.vmem %s141, 48
        %v336 = vld [vmem:[%s335] sm:$0xff]
        %v337 = vld [vmem:[%s335 + $0x8] sm:$0xff]
        %v338 = vld [vmem:[%s335 + $0x18] sm:$0xff]
        %v339 = vld [vmem:[%s335 + $0x20] sm:$0xff]
        %v340 = vld [vmem:[%s335 + $0x30] sm:$0xff]
        %v341 = vld [vmem:[%s335 + $0x38] sm:$0xff]
        %v342 = vld [vmem:[%s335 + $0x48] sm:$0xff]
        %v343 = vld [vmem:[%s335 + $0x50] sm:$0xff]
        %v344 = vld [vmem:[%s335 + $0x60] sm:$0xff]
        %v345 = vld [vmem:[%s335 + $0x68] sm:$0xff]
        %v346 = vld [vmem:[%s335 + $0x78] sm:$0xff]
        %v347 = vld [vmem:[%s335 + $0x80] sm:$0xff]
        %v348 = vld [vmem:[%s335 + $0x90] sm:$0xff]
        %v349 = vld [vmem:[%s335 + $0x98] sm:$0xff]
        %v350 = vld [vmem:[%s335 + $0xa8] sm:$0xff]
        %v351 = vld [vmem:[%s335 + $0xb0] sm:$0xff]
        %v352 = vld [vmem:[%s335 + $0xc0] sm:$0xff]
        %v353 = vld [vmem:[%s335 + $0xc8] sm:$0xff]
        %v354 = vld [vmem:[%s335 + $0xd8] sm:$0xff]
        %v355 = vld [vmem:[%s335 + $0xe0] sm:$0xff]
        %v356 = vld [vmem:[%s335 + $0xf0] sm:$0xff]
        %v357 = vld [vmem:[%s335 + $0xf8] sm:$0xff]
        %v358 = vld [vmem:[%s335 + $0x108] sm:$0xff]
        %v359 = vld [vmem:[%s335 + $0x110] sm:$0xff]
        %v360 = vld [vmem:[%s335 + $0x120] sm:$0xff]
        %v361 = vld [vmem:[%s335 + $0x128] sm:$0xff]
        %v362 = vld [vmem:[%s335 + $0x138] sm:$0xff]
        %v363 = vld [vmem:[%s335 + $0x140] sm:$0xff]
        %v364 = vld [vmem:[%s335 + $0x150] sm:$0xff]
        %v365 = vld [vmem:[%s335 + $0x158] sm:$0xff]
        %v366 = vld [vmem:[%s335 + $0x168] sm:$0xff]
        %v367 = vld [vmem:[%s335 + $0x170] sm:$0xff]
        %v368 = vld [vmem:[%s335 + $0x1] sm:$0xff]
        %v369 = vld [vmem:[%s335 + $0x9] sm:$0xff]
        %v370 = vld [vmem:[%s335 + $0x19] sm:$0xff]
        %v371 = vld [vmem:[%s335 + $0x21] sm:$0xff]
        %v372 = vld [vmem:[%s335 + $0x31] sm:$0xff]
        %v373 = vld [vmem:[%s335 + $0x39] sm:$0xff]
        %v374 = vld [vmem:[%s335 + $0x49] sm:$0xff]
        %v375 = vld [vmem:[%s335 + $0x51] sm:$0xff]
        %v376 = vld [vmem:[%s335 + $0x61] sm:$0xff]
        %v377 = vld [vmem:[%s335 + $0x69] sm:$0xff]
        %v378 = vld [vmem:[%s335 + $0x79] sm:$0xff]
        %v379 = vld [vmem:[%s335 + $0x81] sm:$0xff]
        %v380 = vld [vmem:[%s335 + $0x91] sm:$0xff]
        %v381 = vld [vmem:[%s335 + $0x99] sm:$0xff]
        %v382 = vld [vmem:[%s335 + $0xa9] sm:$0xff]
        %v383 = vld [vmem:[%s335 + $0xb1] sm:$0xff]
        %v384 = vld [vmem:[%s335 + $0xc1] sm:$0xff]
        %v385 = vld [vmem:[%s335 + $0xc9] sm:$0xff]
        %v386 = vld [vmem:[%s335 + $0xd9] sm:$0xff]
        %v387 = vld [vmem:[%s335 + $0xe1] sm:$0xff]
        %v388 = vld [vmem:[%s335 + $0xf1] sm:$0xff]
        %v389 = vld [vmem:[%s335 + $0xf9] sm:$0xff]
        %v390 = vld [vmem:[%s335 + $0x109] sm:$0xff]
        %v391 = vld [vmem:[%s335 + $0x111] sm:$0xff]
        %v392 = vld [vmem:[%s335 + $0x121] sm:$0xff]
        %v393 = vld [vmem:[%s335 + $0x129] sm:$0xff]
        %v394 = vld [vmem:[%s335 + $0x139] sm:$0xff]
        %v395 = vld [vmem:[%s335 + $0x141] sm:$0xff]
        %v396 = vld [vmem:[%s335 + $0x151] sm:$0xff]
        %v397 = vld [vmem:[%s335 + $0x159] sm:$0xff]
        %v398 = vld [vmem:[%s335 + $0x169] sm:$0xff]
        %v399 = vld [vmem:[%s335 + $0x171] sm:$0xff]
        %v400 = vld [vmem:[%s335 + $0x2] sm:$0xff]
        %v401 = vld [vmem:[%s335 + $0xa] sm:$0xff]
        %v402 = vld [vmem:[%s335 + $0x1a] sm:$0xff]
        %v403 = vld [vmem:[%s335 + $0x22] sm:$0xff]
        %v404 = vld [vmem:[%s335 + $0x32] sm:$0xff]
        %v405 = vld [vmem:[%s335 + $0x3a] sm:$0xff]
        %v406 = vld [vmem:[%s335 + $0x4a] sm:$0xff]
        %v407 = vld [vmem:[%s335 + $0x52] sm:$0xff]
        %v408 = vld [vmem:[%s335 + $0x62] sm:$0xff]
        %v409 = vld [vmem:[%s335 + $0x6a] sm:$0xff]
        %v410 = vld [vmem:[%s335 + $0x7a] sm:$0xff]
        %v411 = vld [vmem:[%s335 + $0x82] sm:$0xff]
        %v412 = vld [vmem:[%s335 + $0x92] sm:$0xff]
        %v413 = vld [vmem:[%s335 + $0x9a] sm:$0xff]
        %v414 = vld [vmem:[%s335 + $0xaa] sm:$0xff]
        %v415 = vld [vmem:[%s335 + $0xb2] sm:$0xff]
        %v416 = vld [vmem:[%s335 + $0xc2] sm:$0xff]
        %v417 = vld [vmem:[%s335 + $0xca] sm:$0xff]
        %v418 = vld [vmem:[%s335 + $0xda] sm:$0xff]
        %v419 = vld [vmem:[%s335 + $0xe2] sm:$0xff]
        %v420 = vld [vmem:[%s335 + $0xf2] sm:$0xff]
        %v421 = vld [vmem:[%s335 + $0xfa] sm:$0xff]
        %v422 = vld [vmem:[%s335 + $0x10a] sm:$0xff]
        %v423 = vld [vmem:[%s335 + $0x112] sm:$0xff]
        %v424 = vld [vmem:[%s335 + $0x122] sm:$0xff]
        %v425 = vld [vmem:[%s335 + $0x12a] sm:$0xff]
        %v426 = vld [vmem:[%s335 + $0x13a] sm:$0xff]
        %v427 = vld [vmem:[%s335 + $0x142] sm:$0xff]
        %v428 = vld [vmem:[%s335 + $0x152] sm:$0xff]
        %v429 = vld [vmem:[%s335 + $0x15a] sm:$0xff]
        %v430 = vld [vmem:[%s335 + $0x16a] sm:$0xff]
        %v431 = vld [vmem:[%s335 + $0x172] sm:$0xff]
        %464 = vrot.lane.b32.xlu0 %v174, 4
        %v465 = vpop.permute.xlu0 %464
        %466 = vrot.lane.b32.xlu0 %v175, 4
        %v467 = vpop.permute.xlu0 %466
        %468 = vrot.lane.b32.xlu0 %v176, 4
        %v469 = vpop.permute.xlu0 %468
        %470 = vrot.lane.b32.xlu0 %v177, 4
        %v471 = vpop.permute.xlu0 %470
        %472 = vrot.lane.b32.xlu0 %v178, 4
        %v473 = vpop.permute.xlu0 %472
        %474 = vrot.lane.b32.xlu0 %v179, 4
        %v475 = vpop.permute.xlu0 %474
        %476 = vrot.lane.b32.xlu0 %v180, 4
        %v477 = vpop.permute.xlu0 %476
        %478 = vrot.lane.b32.xlu0 %v181, 4
        %v479 = vpop.permute.xlu0 %478
        %480 = vrot.lane.b32.xlu0 %v182, 4
        %v481 = vpop.permute.xlu0 %480
        %482 = vrot.lane.b32.xlu0 %v183, 4
        %v483 = vpop.permute.xlu0 %482
        %484 = vrot.lane.b32.xlu0 %v184, 4
        %v485 = vpop.permute.xlu0 %484
        %486 = vrot.lane.b32.xlu0 %v185, 4
        %v487 = vpop.permute.xlu0 %486
        %488 = vrot.lane.b32.xlu0 %v186, 4
        %v489 = vpop.permute.xlu0 %488
        %490 = vrot.lane.b32.xlu0 %v187, 4
        %v491 = vpop.permute.xlu0 %490
        %492 = vrot.lane.b32.xlu0 %v188, 4
        %v493 = vpop.permute.xlu0 %492
        %494 = vrot.lane.b32.xlu0 %v189, 4
        %v495 = vpop.permute.xlu0 %494
        %496 = vrot.lane.b32.xlu0 %v190, 4
        %v497 = vpop.permute.xlu0 %496
        %498 = vrot.lane.b32.xlu0 %v191, 4
        %v499 = vpop.permute.xlu0 %498
        %500 = vrot.lane.b32.xlu0 %v192, 4
        %v501 = vpop.permute.xlu0 %500
        %502 = vrot.lane.b32.xlu0 %v193, 4
        %v503 = vpop.permute.xlu0 %502
        %504 = vrot.lane.b32.xlu0 %v194, 4
        %v505 = vpop.permute.xlu0 %504
        %506 = vrot.lane.b32.xlu0 %v195, 4
        %v507 = vpop.permute.xlu0 %506
        %508 = vrot.lane.b32.xlu0 %v196, 4
        %v509 = vpop.permute.xlu0 %508
        %510 = vrot.lane.b32.xlu0 %v197, 4
        %v511 = vpop.permute.xlu0 %510
        %512 = vrot.lane.b32.xlu0 %v198, 4
        %v513 = vpop.permute.xlu0 %512
        %514 = vrot.lane.b32.xlu0 %v199, 4
        %v515 = vpop.permute.xlu0 %514
        %516 = vrot.lane.b32.xlu0 %v200, 4
        %v517 = vpop.permute.xlu0 %516
        %518 = vrot.lane.b32.xlu0 %v201, 4
        %v519 = vpop.permute.xlu0 %518
        %520 = vrot.lane.b32.xlu0 %v202, 4
        %v521 = vpop.permute.xlu0 %520
        %522 = vrot.lane.b32.xlu0 %v203, 4
        %v523 = vpop.permute.xlu0 %522
        %524 = vrot.lane.b32.xlu0 %v204, 4
        %v525 = vpop.permute.xlu0 %524
        %526 = vrot.lane.b32.xlu0 %v205, 4
        %v527 = vpop.permute.xlu0 %526
        %592 = vrot.lane.b32.xlu0 %v206, 8
        %v593 = vpop.permute.xlu0 %592
        %594 = vrot.lane.b32.xlu0 %v207, 8
        %v595 = vpop.permute.xlu0 %594
        %596 = vrot.lane.b32.xlu0 %v208, 8
        %v597 = vpop.permute.xlu0 %596
        %598 = vrot.lane.b32.xlu0 %v209, 8
        %v599 = vpop.permute.xlu0 %598
        %600 = vrot.lane.b32.xlu0 %v210, 8
        %v601 = vpop.permute.xlu0 %600
        %602 = vrot.lane.b32.xlu0 %v211, 8
        %v603 = vpop.permute.xlu0 %602
        %604 = vrot.lane.b32.xlu0 %v212, 8
        %v605 = vpop.permute.xlu0 %604
        %606 = vrot.lane.b32.xlu0 %v213, 8
        %v607 = vpop.permute.xlu0 %606
        %608 = vrot.lane.b32.xlu0 %v214, 8
        %v609 = vpop.permute.xlu0 %608
        %610 = vrot.lane.b32.xlu0 %v215, 8
        %v611 = vpop.permute.xlu0 %610
        %612 = vrot.lane.b32.xlu0 %v216, 8
        %v613 = vpop.permute.xlu0 %612
        %614 = vrot.lane.b32.xlu0 %v217, 8
        %v615 = vpop.permute.xlu0 %614
        %616 = vrot.lane.b32.xlu0 %v218, 8
        %v617 = vpop.permute.xlu0 %616
        %618 = vrot.lane.b32.xlu0 %v219, 8
        %v619 = vpop.permute.xlu0 %618
        %620 = vrot.lane.b32.xlu0 %v220, 8
        %v621 = vpop.permute.xlu0 %620
        %622 = vrot.lane.b32.xlu0 %v221, 8
        %v623 = vpop.permute.xlu0 %622
        %624 = vrot.lane.b32.xlu0 %v222, 8
        %v625 = vpop.permute.xlu0 %624
        %626 = vrot.lane.b32.xlu0 %v223, 8
        %v627 = vpop.permute.xlu0 %626
        %628 = vrot.lane.b32.xlu0 %v224, 8
        %v629 = vpop.permute.xlu0 %628
        %630 = vrot.lane.b32.xlu0 %v225, 8
        %v631 = vpop.permute.xlu0 %630
        %632 = vrot.lane.b32.xlu0 %v226, 8
        %v633 = vpop.permute.xlu0 %632
        %634 = vrot.lane.b32.xlu0 %v227, 8
        %v635 = vpop.permute.xlu0 %634
        %636 = vrot.lane.b32.xlu0 %v228, 8
        %v637 = vpop.permute.xlu0 %636
        %638 = vrot.lane.b32.xlu0 %v229, 8
        %v639 = vpop.permute.xlu0 %638
        %640 = vrot.lane.b32.xlu0 %v230, 8
        %v641 = vpop.permute.xlu0 %640
        %642 = vrot.lane.b32.xlu0 %v231, 8
        %v643 = vpop.permute.xlu0 %642
        %644 = vrot.lane.b32.xlu0 %v232, 8
        %v645 = vpop.permute.xlu0 %644
        %646 = vrot.lane.b32.xlu0 %v233, 8
        %v647 = vpop.permute.xlu0 %646
        %648 = vrot.lane.b32.xlu0 %v234, 8
        %v649 = vpop.permute.xlu0 %648
        %650 = vrot.lane.b32.xlu0 %v235, 8
        %v651 = vpop.permute.xlu0 %650
        %652 = vrot.lane.b32.xlu0 %v236, 8
        %v653 = vpop.permute.xlu0 %652
        %654 = vrot.lane.b32.xlu0 %v237, 8
        %v655 = vpop.permute.xlu0 %654
        %720 = vrot.lane.b32.xlu0 %v239, 12
        %v721 = vpop.permute.xlu0 %720
        %722 = vrot.lane.b32.xlu0 %v240, 12
        %v723 = vpop.permute.xlu0 %722
        %724 = vrot.lane.b32.xlu0 %v241, 12
        %v725 = vpop.permute.xlu0 %724
        %726 = vrot.lane.b32.xlu0 %v242, 12
        %v727 = vpop.permute.xlu0 %726
        %728 = vrot.lane.b32.xlu0 %v243, 12
        %v729 = vpop.permute.xlu0 %728
        %730 = vrot.lane.b32.xlu0 %v244, 12
        %v731 = vpop.permute.xlu0 %730
        %732 = vrot.lane.b32.xlu0 %v245, 12
        %v733 = vpop.permute.xlu0 %732
        %734 = vrot.lane.b32.xlu0 %v246, 12
        %v735 = vpop.permute.xlu0 %734
        %736 = vrot.lane.b32.xlu0 %v247, 12
        %v737 = vpop.permute.xlu0 %736
        %738 = vrot.lane.b32.xlu0 %v248, 12
        %v739 = vpop.permute.xlu0 %738
        %740 = vrot.lane.b32.xlu0 %v249, 12
        %v741 = vpop.permute.xlu0 %740
        %742 = vrot.lane.b32.xlu0 %v250, 12
        %v743 = vpop.permute.xlu0 %742
        %744 = vrot.lane.b32.xlu0 %v251, 12
        %v745 = vpop.permute.xlu0 %744
        %746 = vrot.lane.b32.xlu0 %v252, 12
        %v747 = vpop.permute.xlu0 %746
        %748 = vrot.lane.b32.xlu0 %v253, 12
        %v749 = vpop.permute.xlu0 %748
        %750 = vrot.lane.b32.xlu0 %v254, 12
        %v751 = vpop.permute.xlu0 %750
        %752 = vrot.lane.b32.xlu0 %v255, 12
        %v753 = vpop.permute.xlu0 %752
        %754 = vrot.lane.b32.xlu0 %v256, 12
        %v755 = vpop.permute.xlu0 %754
        %756 = vrot.lane.b32.xlu0 %v257, 12
        %v757 = vpop.permute.xlu0 %756
        %758 = vrot.lane.b32.xlu0 %v258, 12
        %v759 = vpop.permute.xlu0 %758
        %760 = vrot.lane.b32.xlu0 %v259, 12
        %v761 = vpop.permute.xlu0 %760
        %762 = vrot.lane.b32.xlu0 %v260, 12
        %v763 = vpop.permute.xlu0 %762
        %764 = vrot.lane.b32.xlu0 %v261, 12
        %v765 = vpop.permute.xlu0 %764
        %766 = vrot.lane.b32.xlu0 %v262, 12
        %v767 = vpop.permute.xlu0 %766
        %768 = vrot.lane.b32.xlu0 %v263, 12
        %v769 = vpop.permute.xlu0 %768
        %770 = vrot.lane.b32.xlu0 %v264, 12
        %v771 = vpop.permute.xlu0 %770
        %772 = vrot.lane.b32.xlu0 %v265, 12
        %v773 = vpop.permute.xlu0 %772
        %774 = vrot.lane.b32.xlu0 %v266, 12
        %v775 = vpop.permute.xlu0 %774
        %776 = vrot.lane.b32.xlu0 %v267, 12
        %v777 = vpop.permute.xlu0 %776
        %778 = vrot.lane.b32.xlu0 %v268, 12
        %v779 = vpop.permute.xlu0 %778
        %780 = vrot.lane.b32.xlu0 %v269, 12
        %v781 = vpop.permute.xlu0 %780
        %782 = vrot.lane.b32.xlu0 %v270, 12
        %v783 = vpop.permute.xlu0 %782
        %848 = vrot.lane.b32.xlu0 %v271, 16
        %v849 = vpop.permute.xlu0 %848
        %850 = vrot.lane.b32.xlu0 %v272, 16
        %v851 = vpop.permute.xlu0 %850
        %852 = vrot.lane.b32.xlu0 %v273, 16
        %v853 = vpop.permute.xlu0 %852
        %854 = vrot.lane.b32.xlu0 %v274, 16
        %v855 = vpop.permute.xlu0 %854
        %856 = vrot.lane.b32.xlu0 %v275, 16
        %v857 = vpop.permute.xlu0 %856
        %858 = vrot.lane.b32.xlu0 %v276, 16
        %v859 = vpop.permute.xlu0 %858
        %860 = vrot.lane.b32.xlu0 %v277, 16
        %v861 = vpop.permute.xlu0 %860
        %862 = vrot.lane.b32.xlu0 %v278, 16
        %v863 = vpop.permute.xlu0 %862
        %864 = vrot.lane.b32.xlu0 %v279, 16
        %v865 = vpop.permute.xlu0 %864
        %866 = vrot.lane.b32.xlu0 %v280, 16
        %v867 = vpop.permute.xlu0 %866
        %868 = vrot.lane.b32.xlu0 %v281, 16
        %v869 = vpop.permute.xlu0 %868
        %870 = vrot.lane.b32.xlu0 %v282, 16
        %v871 = vpop.permute.xlu0 %870
        %872 = vrot.lane.b32.xlu0 %v283, 16
        %v873 = vpop.permute.xlu0 %872
        %874 = vrot.lane.b32.xlu0 %v284, 16
        %v875 = vpop.permute.xlu0 %874
        %876 = vrot.lane.b32.xlu0 %v285, 16
        %v877 = vpop.permute.xlu0 %876
        %878 = vrot.lane.b32.xlu0 %v286, 16
        %v879 = vpop.permute.xlu0 %878
        %880 = vrot.lane.b32.xlu0 %v287, 16
        %v881 = vpop.permute.xlu0 %880
        %882 = vrot.lane.b32.xlu0 %v288, 16
        %v883 = vpop.permute.xlu0 %882
        %884 = vrot.lane.b32.xlu0 %v289, 16
        %v885 = vpop.permute.xlu0 %884
        %886 = vrot.lane.b32.xlu0 %v290, 16
        %v887 = vpop.permute.xlu0 %886
        %888 = vrot.lane.b32.xlu0 %v291, 16
        %v889 = vpop.permute.xlu0 %888
        %890 = vrot.lane.b32.xlu0 %v292, 16
        %v891 = vpop.permute.xlu0 %890
        %892 = vrot.lane.b32.xlu0 %v293, 16
        %v893 = vpop.permute.xlu0 %892
        %894 = vrot.lane.b32.xlu0 %v294, 16
        %v895 = vpop.permute.xlu0 %894
        %896 = vrot.lane.b32.xlu0 %v295, 16
        %v897 = vpop.permute.xlu0 %896
        %898 = vrot.lane.b32.xlu0 %v296, 16
        %v899 = vpop.permute.xlu0 %898
        %900 = vrot.lane.b32.xlu0 %v297, 16
        %v901 = vpop.permute.xlu0 %900
        %902 = vrot.lane.b32.xlu0 %v298, 16
        %v903 = vpop.permute.xlu0 %902
        %904 = vrot.lane.b32.xlu0 %v299, 16
        %v905 = vpop.permute.xlu0 %904
        %906 = vrot.lane.b32.xlu0 %v300, 16
        %v907 = vpop.permute.xlu0 %906
        %908 = vrot.lane.b32.xlu0 %v301, 16
        %v909 = vpop.permute.xlu0 %908
        %910 = vrot.lane.b32.xlu0 %v302, 16
        %v911 = vpop.permute.xlu0 %910
        %976 = vrot.lane.b32.xlu0 %v303, 20
        %v977 = vpop.permute.xlu0 %976
        %978 = vrot.lane.b32.xlu0 %v304, 20
        %v979 = vpop.permute.xlu0 %978
        %980 = vrot.lane.b32.xlu0 %v305, 20
        %v981 = vpop.permute.xlu0 %980
        %982 = vrot.lane.b32.xlu0 %v306, 20
        %v983 = vpop.permute.xlu0 %982
        %984 = vrot.lane.b32.xlu0 %v307, 20
        %v985 = vpop.permute.xlu0 %984
        %986 = vrot.lane.b32.xlu0 %v308, 20
        %v987 = vpop.permute.xlu0 %986
        %988 = vrot.lane.b32.xlu0 %v309, 20
        %v989 = vpop.permute.xlu0 %988
        %990 = vrot.lane.b32.xlu0 %v310, 20
        %v991 = vpop.permute.xlu0 %990
        %992 = vrot.lane.b32.xlu0 %v311, 20
        %v993 = vpop.permute.xlu0 %992
        %994 = vrot.lane.b32.xlu0 %v312, 20
        %v995 = vpop.permute.xlu0 %994
        %996 = vrot.lane.b32.xlu0 %v313, 20
        %v997 = vpop.permute.xlu0 %996
        %998 = vrot.lane.b32.xlu0 %v314, 20
        %v999 = vpop.permute.xlu0 %998
        %1000 = vrot.lane.b32.xlu0 %v315, 20
        %v1001 = vpop.permute.xlu0 %1000
        %1002 = vrot.lane.b32.xlu0 %v316, 20
        %v1003 = vpop.permute.xlu0 %1002
        %1004 = vrot.lane.b32.xlu0 %v317, 20
        %v1005 = vpop.permute.xlu0 %1004
        %1006 = vrot.lane.b32.xlu0 %v318, 20
        %v1007 = vpop.permute.xlu0 %1006
        %1008 = vrot.lane.b32.xlu0 %v319, 20
        %v1009 = vpop.permute.xlu0 %1008
        %1010 = vrot.lane.b32.xlu0 %v320, 20
        %v1011 = vpop.permute.xlu0 %1010
        %1012 = vrot.lane.b32.xlu0 %v321, 20
        %v1013 = vpop.permute.xlu0 %1012
        %1014 = vrot.lane.b32.xlu0 %v322, 20
        %v1015 = vpop.permute.xlu0 %1014
        %1016 = vrot.lane.b32.xlu0 %v323, 20
        %v1017 = vpop.permute.xlu0 %1016
        %1018 = vrot.lane.b32.xlu0 %v324, 20
        %v1019 = vpop.permute.xlu0 %1018
        %1020 = vrot.lane.b32.xlu0 %v325, 20
        %v1021 = vpop.permute.xlu0 %1020
        %1022 = vrot.lane.b32.xlu0 %v326, 20
        %v1023 = vpop.permute.xlu0 %1022
        %1024 = vrot.lane.b32.xlu0 %v327, 20
        %v1025 = vpop.permute.xlu0 %1024
        %1026 = vrot.lane.b32.xlu0 %v328, 20
        %v1027 = vpop.permute.xlu0 %1026
        %1028 = vrot.lane.b32.xlu0 %v329, 20
        %v1029 = vpop.permute.xlu0 %1028
        %1030 = vrot.lane.b32.xlu0 %v330, 20
        %v1031 = vpop.permute.xlu0 %1030
        %1032 = vrot.lane.b32.xlu0 %v331, 20
        %v1033 = vpop.permute.xlu0 %1032
        %1034 = vrot.lane.b32.xlu0 %v332, 20
        %v1035 = vpop.permute.xlu0 %1034
        %1036 = vrot.lane.b32.xlu0 %v333, 20
        %v1037 = vpop.permute.xlu0 %1036
        %1038 = vrot.lane.b32.xlu0 %v334, 20
        %v1039 = vpop.permute.xlu0 %1038
        %1104 = vrot.lane.b32.xlu0 %v336, 24
        %v1105 = vpop.permute.xlu0 %1104
        %1106 = vrot.lane.b32.xlu0 %v337, 24
        %v1107 = vpop.permute.xlu0 %1106
        %1108 = vrot.lane.b32.xlu0 %v338, 24
        %v1109 = vpop.permute.xlu0 %1108
        %1110 = vrot.lane.b32.xlu0 %v339, 24
        %v1111 = vpop.permute.xlu0 %1110
        %1112 = vrot.lane.b32.xlu0 %v340, 24
        %v1113 = vpop.permute.xlu0 %1112
        %1114 = vrot.lane.b32.xlu0 %v341, 24
        %v1115 = vpop.permute.xlu0 %1114
        %1116 = vrot.lane.b32.xlu0 %v342, 24
        %v1117 = vpop.permute.xlu0 %1116
        %1118 = vrot.lane.b32.xlu0 %v343, 24
        %v1119 = vpop.permute.xlu0 %1118
        %1120 = vrot.lane.b32.xlu0 %v344, 24
        %v1121 = vpop.permute.xlu0 %1120
        %1122 = vrot.lane.b32.xlu0 %v345, 24
        %v1123 = vpop.permute.xlu0 %1122
        %1124 = vrot.lane.b32.xlu0 %v346, 24
        %v1125 = vpop.permute.xlu0 %1124
        %1126 = vrot.lane.b32.xlu0 %v347, 24
        %v1127 = vpop.permute.xlu0 %1126
        %1128 = vrot.lane.b32.xlu0 %v348, 24
        %v1129 = vpop.permute.xlu0 %1128
        %1130 = vrot.lane.b32.xlu0 %v349, 24
        %v1131 = vpop.permute.xlu0 %1130
        %1132 = vrot.lane.b32.xlu0 %v350, 24
        %v1133 = vpop.permute.xlu0 %1132
        %1134 = vrot.lane.b32.xlu0 %v351, 24
        %v1135 = vpop.permute.xlu0 %1134
        %1136 = vrot.lane.b32.xlu0 %v352, 24
        %v1137 = vpop.permute.xlu0 %1136
        %1138 = vrot.lane.b32.xlu0 %v353, 24
        %v1139 = vpop.permute.xlu0 %1138
        %1140 = vrot.lane.b32.xlu0 %v354, 24
        %v1141 = vpop.permute.xlu0 %1140
        %1142 = vrot.lane.b32.xlu0 %v355, 24
        %v1143 = vpop.permute.xlu0 %1142
        %1144 = vrot.lane.b32.xlu0 %v356, 24
        %v1145 = vpop.permute.xlu0 %1144
        %1146 = vrot.lane.b32.xlu0 %v357, 24
        %v1147 = vpop.permute.xlu0 %1146
        %1148 = vrot.lane.b32.xlu0 %v358, 24
        %v1149 = vpop.permute.xlu0 %1148
        %1150 = vrot.lane.b32.xlu0 %v359, 24
        %v1151 = vpop.permute.xlu0 %1150
        %1152 = vrot.lane.b32.xlu0 %v360, 24
        %v1153 = vpop.permute.xlu0 %1152
        %1154 = vrot.lane.b32.xlu0 %v361, 24
        %v1155 = vpop.permute.xlu0 %1154
        %1156 = vrot.lane.b32.xlu0 %v362, 24
        %v1157 = vpop.permute.xlu0 %1156
        %1158 = vrot.lane.b32.xlu0 %v363, 24
        %v1159 = vpop.permute.xlu0 %1158
        %1160 = vrot.lane.b32.xlu0 %v364, 24
        %v1161 = vpop.permute.xlu0 %1160
        %1162 = vrot.lane.b32.xlu0 %v365, 24
        %v1163 = vpop.permute.xlu0 %1162
        %1164 = vrot.lane.b32.xlu0 %v366, 24
        %v1165 = vpop.permute.xlu0 %1164
        %1166 = vrot.lane.b32.xlu0 %v367, 24
        %v1167 = vpop.permute.xlu0 %1166
        %1232 = vrot.lane.b32.xlu0 %v368, 28
        %v1233 = vpop.permute.xlu0 %1232
        %1234 = vrot.lane.b32.xlu0 %v369, 28
        %v1235 = vpop.permute.xlu0 %1234
        %1236 = vrot.lane.b32.xlu0 %v370, 28
        %v1237 = vpop.permute.xlu0 %1236
        %1238 = vrot.lane.b32.xlu0 %v371, 28
        %v1239 = vpop.permute.xlu0 %1238
        %1240 = vrot.lane.b32.xlu0 %v372, 28
        %v1241 = vpop.permute.xlu0 %1240
        %1242 = vrot.lane.b32.xlu0 %v373, 28
        %v1243 = vpop.permute.xlu0 %1242
        %1244 = vrot.lane.b32.xlu0 %v374, 28
        %v1245 = vpop.permute.xlu0 %1244
        %1246 = vrot.lane.b32.xlu0 %v375, 28
        %v1247 = vpop.permute.xlu0 %1246
        %1248 = vrot.lane.b32.xlu0 %v376, 28
        %v1249 = vpop.permute.xlu0 %1248
        %1250 = vrot.lane.b32.xlu0 %v377, 28
        %v1251 = vpop.permute.xlu0 %1250
        %1252 = vrot.lane.b32.xlu0 %v378, 28
        %v1253 = vpop.permute.xlu0 %1252
        %1254 = vrot.lane.b32.xlu0 %v379, 28
        %v1255 = vpop.permute.xlu0 %1254
        %1256 = vrot.lane.b32.xlu0 %v380, 28
        %v1257 = vpop.permute.xlu0 %1256
        %1258 = vrot.lane.b32.xlu0 %v381, 28
        %v1259 = vpop.permute.xlu0 %1258
        %1260 = vrot.lane.b32.xlu0 %v382, 28
        %v1261 = vpop.permute.xlu0 %1260
        %1262 = vrot.lane.b32.xlu0 %v383, 28
        %v1263 = vpop.permute.xlu0 %1262
        %1264 = vrot.lane.b32.xlu0 %v384, 28
        %v1265 = vpop.permute.xlu0 %1264
        %1266 = vrot.lane.b32.xlu0 %v385, 28
        %v1267 = vpop.permute.xlu0 %1266
        %1268 = vrot.lane.b32.xlu0 %v386, 28
        %v1269 = vpop.permute.xlu0 %1268
        %1270 = vrot.lane.b32.xlu0 %v387, 28
        %v1271 = vpop.permute.xlu0 %1270
        %1272 = vrot.lane.b32.xlu0 %v388, 28
        %v1273 = vpop.permute.xlu0 %1272
        %1274 = vrot.lane.b32.xlu0 %v389, 28
        %v1275 = vpop.permute.xlu0 %1274
        %1276 = vrot.lane.b32.xlu0 %v390, 28
        %v1277 = vpop.permute.xlu0 %1276
        %1278 = vrot.lane.b32.xlu0 %v391, 28
        %v1279 = vpop.permute.xlu0 %1278
        %1280 = vrot.lane.b32.xlu0 %v392, 28
        %v1281 = vpop.permute.xlu0 %1280
        %1282 = vrot.lane.b32.xlu0 %v393, 28
        %v1283 = vpop.permute.xlu0 %1282
        %1284 = vrot.lane.b32.xlu0 %v394, 28
        %v1285 = vpop.permute.xlu0 %1284
        %1286 = vrot.lane.b32.xlu0 %v395, 28
        %v1287 = vpop.permute.xlu0 %1286
        %1288 = vrot.lane.b32.xlu0 %v396, 28
        %v1289 = vpop.permute.xlu0 %1288
        %1290 = vrot.lane.b32.xlu0 %v397, 28
        %v1291 = vpop.permute.xlu0 %1290
        %1292 = vrot.lane.b32.xlu0 %v398, 28
        %v1293 = vpop.permute.xlu0 %1292
        %1294 = vrot.lane.b32.xlu0 %v399, 28
        %v1295 = vpop.permute.xlu0 %1294
        %1360 = vrot.lane.b32.xlu0 %v400, 32
        %v1361 = vpop.permute.xlu0 %1360
        %1362 = vrot.lane.b32.xlu0 %v401, 32
        %v1363 = vpop.permute.xlu0 %1362
        %1364 = vrot.lane.b32.xlu0 %v402, 32
        %v1365 = vpop.permute.xlu0 %1364
        %1366 = vrot.lane.b32.xlu0 %v403, 32
        %v1367 = vpop.permute.xlu0 %1366
        %1368 = vrot.lane.b32.xlu0 %v404, 32
        %v1369 = vpop.permute.xlu0 %1368
        %1370 = vrot.lane.b32.xlu0 %v405, 32
        %v1371 = vpop.permute.xlu0 %1370
        %1372 = vrot.lane.b32.xlu0 %v406, 32
        %v1373 = vpop.permute.xlu0 %1372
        %1374 = vrot.lane.b32.xlu0 %v407, 32
        %v1375 = vpop.permute.xlu0 %1374
        %1376 = vrot.lane.b32.xlu0 %v408, 32
        %v1377 = vpop.permute.xlu0 %1376
        %1378 = vrot.lane.b32.xlu0 %v409, 32
        %v1379 = vpop.permute.xlu0 %1378
        %1380 = vrot.lane.b32.xlu0 %v410, 32
        %v1381 = vpop.permute.xlu0 %1380
        %1382 = vrot.lane.b32.xlu0 %v411, 32
        %v1383 = vpop.permute.xlu0 %1382
        %1384 = vrot.lane.b32.xlu0 %v412, 32
        %v1385 = vpop.permute.xlu0 %1384
        %1386 = vrot.lane.b32.xlu0 %v413, 32
        %v1387 = vpop.permute.xlu0 %1386
        %1388 = vrot.lane.b32.xlu0 %v414, 32
        %v1389 = vpop.permute.xlu0 %1388
        %1390 = vrot.lane.b32.xlu0 %v415, 32
        %v1391 = vpop.permute.xlu0 %1390
        %1392 = vrot.lane.b32.xlu0 %v416, 32
        %v1393 = vpop.permute.xlu0 %1392
        %1394 = vrot.lane.b32.xlu0 %v417, 32
        %v1395 = vpop.permute.xlu0 %1394
        %1396 = vrot.lane.b32.xlu0 %v418, 32
        %v1397 = vpop.permute.xlu0 %1396
        %1398 = vrot.lane.b32.xlu0 %v419, 32
        %v1399 = vpop.permute.xlu0 %1398
        %1400 = vrot.lane.b32.xlu0 %v420, 32
        %v1401 = vpop.permute.xlu0 %1400
        %1402 = vrot.lane.b32.xlu0 %v421, 32
        %v1403 = vpop.permute.xlu0 %1402
        %1404 = vrot.lane.b32.xlu0 %v422, 32
        %v1405 = vpop.permute.xlu0 %1404
        %1406 = vrot.lane.b32.xlu0 %v423, 32
        %v1407 = vpop.permute.xlu0 %1406
        %1408 = vrot.lane.b32.xlu0 %v424, 32
        %v1409 = vpop.permute.xlu0 %1408
        %1410 = vrot.lane.b32.xlu0 %v425, 32
        %v1411 = vpop.permute.xlu0 %1410
        %1412 = vrot.lane.b32.xlu0 %v426, 32
        %v1413 = vpop.permute.xlu0 %1412
        %1414 = vrot.lane.b32.xlu0 %v427, 32
        %v1415 = vpop.permute.xlu0 %1414
        %1416 = vrot.lane.b32.xlu0 %v428, 32
        %v1417 = vpop.permute.xlu0 %1416
        %1418 = vrot.lane.b32.xlu0 %v429, 32
        %v1419 = vpop.permute.xlu0 %1418
        %1420 = vrot.lane.b32.xlu0 %v430, 32
        %v1421 = vpop.permute.xlu0 %1420
        %1422 = vrot.lane.b32.xlu0 %v431, 32
        %v1423 = vpop.permute.xlu0 %1422
        %vm1456 = vcmask 31744
        %v1457 = vsel %vm1456, %v142, %v465
        %v1458 = vsel %vm1456, %v143, %v467
        %v1459 = vsel %vm1456, %v144, %v469
        %v1460 = vsel %vm1456, %v145, %v471
        %v1461 = vsel %vm1456, %v146, %v473
        %v1462 = vsel %vm1456, %v147, %v475
        %v1463 = vsel %vm1456, %v148, %v477
        %v1464 = vsel %vm1456, %v149, %v479
        %v1465 = vsel %vm1456, %v150, %v481
        %v1466 = vsel %vm1456, %v151, %v483
        %v1467 = vsel %vm1456, %v152, %v485
        %v1468 = vsel %vm1456, %v153, %v487
        %v1469 = vsel %vm1456, %v154, %v489
        %v1470 = vsel %vm1456, %v155, %v491
        %v1471 = vsel %vm1456, %v156, %v493
        %v1472 = vsel %vm1456, %v157, %v495
        %v1473 = vsel %vm1456, %v158, %v497
        %v1474 = vsel %vm1456, %v159, %v499
        %v1475 = vsel %vm1456, %v160, %v501
        %v1476 = vsel %vm1456, %v161, %v503
        %v1477 = vsel %vm1456, %v162, %v505
        %v1478 = vsel %vm1456, %v163, %v507
        %v1479 = vsel %vm1456, %v164, %v509
        %v1480 = vsel %vm1456, %v165, %v511
        %v1481 = vsel %vm1456, %v166, %v513
        %v1482 = vsel %vm1456, %v167, %v515
        %v1483 = vsel %vm1456, %v168, %v517
        %v1484 = vsel %vm1456, %v169, %v519
        %v1485 = vsel %vm1456, %v170, %v521
        %v1486 = vsel %vm1456, %v171, %v523
        %v1487 = vsel %vm1456, %v172, %v525
        %v1488 = vsel %vm1456, %v173, %v527
        %vm1489 = vcmask 64512
        %v1490 = vsel %vm1489, %v1457, %v593
        %v1491 = vsel %vm1489, %v1458, %v595
        %v1492 = vsel %vm1489, %v1459, %v597
        %v1493 = vsel %vm1489, %v1460, %v599
        %v1494 = vsel %vm1489, %v1461, %v601
        %v1495 = vsel %vm1489, %v1462, %v603
        %v1496 = vsel %vm1489, %v1463, %v605
        %v1497 = vsel %vm1489, %v1464, %v607
        %v1498 = vsel %vm1489, %v1465, %v609
        %v1499 = vsel %vm1489, %v1466, %v611
        %v1500 = vsel %vm1489, %v1467, %v613
        %v1501 = vsel %vm1489, %v1468, %v615
        %v1502 = vsel %vm1489, %v1469, %v617
        %v1503 = vsel %vm1489, %v1470, %v619
        %v1504 = vsel %vm1489, %v1471, %v621
        %v1505 = vsel %vm1489, %v1472, %v623
        %v1506 = vsel %vm1489, %v1473, %v625
        %v1507 = vsel %vm1489, %v1474, %v627
        %v1508 = vsel %vm1489, %v1475, %v629
        %v1509 = vsel %vm1489, %v1476, %v631
        %v1510 = vsel %vm1489, %v1477, %v633
        %v1511 = vsel %vm1489, %v1478, %v635
        %v1512 = vsel %vm1489, %v1479, %v637
        %v1513 = vsel %vm1489, %v1480, %v639
        %v1514 = vsel %vm1489, %v1481, %v641
        %v1515 = vsel %vm1489, %v1482, %v643
        %v1516 = vsel %vm1489, %v1483, %v645
        %v1517 = vsel %vm1489, %v1484, %v647
        %v1518 = vsel %vm1489, %v1485, %v649
        %v1519 = vsel %vm1489, %v1486, %v651
        %v1520 = vsel %vm1489, %v1487, %v653
        %v1521 = vsel %vm1489, %v1488, %v655
        %vm1522 = vcmask 97280
        %v1523 = vsel %vm1522, %v1490, %v721
        %v1524 = vsel %vm1522, %v1491, %v723
        %v1525 = vsel %vm1522, %v1492, %v725
        %v1526 = vsel %vm1522, %v1493, %v727
        %v1527 = vsel %vm1522, %v1494, %v729
        %v1528 = vsel %vm1522, %v1495, %v731
        %v1529 = vsel %vm1522, %v1496, %v733
        %v1530 = vsel %vm1522, %v1497, %v735
        %v1531 = vsel %vm1522, %v1498, %v737
        %v1532 = vsel %vm1522, %v1499, %v739
        %v1533 = vsel %vm1522, %v1500, %v741
        %v1534 = vsel %vm1522, %v1501, %v743
        %v1535 = vsel %vm1522, %v1502, %v745
        %v1536 = vsel %vm1522, %v1503, %v747
        %v1537 = vsel %vm1522, %v1504, %v749
        %v1538 = vsel %vm1522, %v1505, %v751
        %v1539 = vsel %vm1522, %v1506, %v753
        %v1540 = vsel %vm1522, %v1507, %v755
        %v1541 = vsel %vm1522, %v1508, %v757
        %v1542 = vsel %vm1522, %v1509, %v759
        %v1543 = vsel %vm1522, %v1510, %v761
        %v1544 = vsel %vm1522, %v1511, %v763
        %v1545 = vsel %vm1522, %v1512, %v765
        %v1546 = vsel %vm1522, %v1513, %v767
        %v1547 = vsel %vm1522, %v1514, %v769
        %v1548 = vsel %vm1522, %v1515, %v771
        %v1549 = vsel %vm1522, %v1516, %v773
        %v1550 = vsel %vm1522, %v1517, %v775
        %v1551 = vsel %vm1522, %v1518, %v777
        %v1552 = vsel %vm1522, %v1519, %v779
        %v1553 = vsel %vm1522, %v1520, %v781
        %v1554 = vsel %vm1522, %v1521, %v783
        %vm1555 = vcmask 130048
        %v1556 = vsel %vm1555, %v1523, %v849
        %v1557 = vsel %vm1555, %v1524, %v851
        %v1558 = vsel %vm1555, %v1525, %v853
        %v1559 = vsel %vm1555, %v1526, %v855
        %v1560 = vsel %vm1555, %v1527, %v857
        %v1561 = vsel %vm1555, %v1528, %v859
        %v1562 = vsel %vm1555, %v1529, %v861
        %v1563 = vsel %vm1555, %v1530, %v863
        %v1564 = vsel %vm1555, %v1531, %v865
        %v1565 = vsel %vm1555, %v1532, %v867
        %v1566 = vsel %vm1555, %v1533, %v869
        %v1567 = vsel %vm1555, %v1534, %v871
        %v1568 = vsel %vm1555, %v1535, %v873
        %v1569 = vsel %vm1555, %v1536, %v875
        %v1570 = vsel %vm1555, %v1537, %v877
        %v1571 = vsel %vm1555, %v1538, %v879
        %v1572 = vsel %vm1555, %v1539, %v881
        %v1573 = vsel %vm1555, %v1540, %v883
        %v1574 = vsel %vm1555, %v1541, %v885
        %v1575 = vsel %vm1555, %v1542, %v887
        %v1576 = vsel %vm1555, %v1543, %v889
        %v1577 = vsel %vm1555, %v1544, %v891
        %v1578 = vsel %vm1555, %v1545, %v893
        %v1579 = vsel %vm1555, %v1546, %v895
        %v1580 = vsel %vm1555, %v1547, %v897
        %v1581 = vsel %vm1555, %v1548, %v899
        %v1582 = vsel %vm1555, %v1549, %v901
        %v1583 = vsel %vm1555, %v1550, %v903
        %v1584 = vsel %vm1555, %v1551, %v905
        %v1585 = vsel %vm1555, %v1552, %v907
        %v1586 = vsel %vm1555, %v1553, %v909
        %v1587 = vsel %vm1555, %v1554, %v911
        %vm1588 = vcmask 162816
        %v1589 = vsel %vm1588, %v1556, %v977
        %v1590 = vsel %vm1588, %v1557, %v979
        %v1591 = vsel %vm1588, %v1558, %v981
        %v1592 = vsel %vm1588, %v1559, %v983
        %v1593 = vsel %vm1588, %v1560, %v985
        %v1594 = vsel %vm1588, %v1561, %v987
        %v1595 = vsel %vm1588, %v1562, %v989
        %v1596 = vsel %vm1588, %v1563, %v991
        %v1597 = vsel %vm1588, %v1564, %v993
        %v1598 = vsel %vm1588, %v1565, %v995
        %v1599 = vsel %vm1588, %v1566, %v997
        %v1600 = vsel %vm1588, %v1567, %v999
        %v1601 = vsel %vm1588, %v1568, %v1001
        %v1602 = vsel %vm1588, %v1569, %v1003
        %v1603 = vsel %vm1588, %v1570, %v1005
        %v1604 = vsel %vm1588, %v1571, %v1007
        %v1605 = vsel %vm1588, %v1572, %v1009
        %v1606 = vsel %vm1588, %v1573, %v1011
        %v1607 = vsel %vm1588, %v1574, %v1013
        %v1608 = vsel %vm1588, %v1575, %v1015
        %v1609 = vsel %vm1588, %v1576, %v1017
        %v1610 = vsel %vm1588, %v1577, %v1019
        %v1611 = vsel %vm1588, %v1578, %v1021
        %v1612 = vsel %vm1588, %v1579, %v1023
        %v1613 = vsel %vm1588, %v1580, %v1025
        %v1614 = vsel %vm1588, %v1581, %v1027
        %v1615 = vsel %vm1588, %v1582, %v1029
        %v1616 = vsel %vm1588, %v1583, %v1031
        %v1617 = vsel %vm1588, %v1584, %v1033
        %v1618 = vsel %vm1588, %v1585, %v1035
        %v1619 = vsel %vm1588, %v1586, %v1037
        %v1620 = vsel %vm1588, %v1587, %v1039
        %vm1621 = vcmask 195584
        %v1622 = vsel %vm1621, %v1589, %v1105
        %v1623 = vsel %vm1621, %v1590, %v1107
        %v1624 = vsel %vm1621, %v1591, %v1109
        %v1625 = vsel %vm1621, %v1592, %v1111
        %v1626 = vsel %vm1621, %v1593, %v1113
        %v1627 = vsel %vm1621, %v1594, %v1115
        %v1628 = vsel %vm1621, %v1595, %v1117
        %v1629 = vsel %vm1621, %v1596, %v1119
        %v1630 = vsel %vm1621, %v1597, %v1121
        %v1631 = vsel %vm1621, %v1598, %v1123
        %v1632 = vsel %vm1621, %v1599, %v1125
        %v1633 = vsel %vm1621, %v1600, %v1127
        %v1634 = vsel %vm1621, %v1601, %v1129
        %v1635 = vsel %vm1621, %v1602, %v1131
        %v1636 = vsel %vm1621, %v1603, %v1133
        %v1637 = vsel %vm1621, %v1604, %v1135
        %v1638 = vsel %vm1621, %v1605, %v1137
        %v1639 = vsel %vm1621, %v1606, %v1139
        %v1640 = vsel %vm1621, %v1607, %v1141
        %v1641 = vsel %vm1621, %v1608, %v1143
        %v1642 = vsel %vm1621, %v1609, %v1145
        %v1643 = vsel %vm1621, %v1610, %v1147
        %v1644 = vsel %vm1621, %v1611, %v1149
        %v1645 = vsel %vm1621, %v1612, %v1151
        %v1646 = vsel %vm1621, %v1613, %v1153
        %v1647 = vsel %vm1621, %v1614, %v1155
        %v1648 = vsel %vm1621, %v1615, %v1157
        %v1649 = vsel %vm1621, %v1616, %v1159
        %v1650 = vsel %vm1621, %v1617, %v1161
        %v1651 = vsel %vm1621, %v1618, %v1163
        %v1652 = vsel %vm1621, %v1619, %v1165
        %v1653 = vsel %vm1621, %v1620, %v1167
        %vm1654 = vcmask 228352
        %v1655 = vsel %vm1654, %v1622, %v1233
        %v1656 = vsel %vm1654, %v1623, %v1235
        %v1657 = vsel %vm1654, %v1624, %v1237
        %v1658 = vsel %vm1654, %v1625, %v1239
        %v1659 = vsel %vm1654, %v1626, %v1241
        %v1660 = vsel %vm1654, %v1627, %v1243
        %v1661 = vsel %vm1654, %v1628, %v1245
        %v1662 = vsel %vm1654, %v1629, %v1247
        %v1663 = vsel %vm1654, %v1630, %v1249
        %v1664 = vsel %vm1654, %v1631, %v1251
        %v1665 = vsel %vm1654, %v1632, %v1253
        %v1666 = vsel %vm1654, %v1633, %v1255
        %v1667 = vsel %vm1654, %v1634, %v1257
        %v1668 = vsel %vm1654, %v1635, %v1259
        %v1669 = vsel %vm1654, %v1636, %v1261
        %v1670 = vsel %vm1654, %v1637, %v1263
        %v1671 = vsel %vm1654, %v1638, %v1265
        %v1672 = vsel %vm1654, %v1639, %v1267
        %v1673 = vsel %vm1654, %v1640, %v1269
        %v1674 = vsel %vm1654, %v1641, %v1271
        %v1675 = vsel %vm1654, %v1642, %v1273
        %v1676 = vsel %vm1654, %v1643, %v1275
        %v1677 = vsel %vm1654, %v1644, %v1277
        %v1678 = vsel %vm1654, %v1645, %v1279
        %v1679 = vsel %vm1654, %v1646, %v1281
        %v1680 = vsel %vm1654, %v1647, %v1283
        %v1681 = vsel %vm1654, %v1648, %v1285
        %v1682 = vsel %vm1654, %v1649, %v1287
        %v1683 = vsel %vm1654, %v1650, %v1289
        %v1684 = vsel %vm1654, %v1651, %v1291
        %v1685 = vsel %vm1654, %v1652, %v1293
        %v1686 = vsel %vm1654, %v1653, %v1295
        %vm1687 = vcmask 261120
        %v1688 = vsel %vm1687, %v1655, %v1361
        %v1689 = vsel %vm1687, %v1656, %v1363
        %v1690 = vsel %vm1687, %v1657, %v1365
        %v1691 = vsel %vm1687, %v1658, %v1367
        %v1692 = vsel %vm1687, %v1659, %v1369
        %v1693 = vsel %vm1687, %v1660, %v1371
        %v1694 = vsel %vm1687, %v1661, %v1373
        %v1695 = vsel %vm1687, %v1662, %v1375
        %v1696 = vsel %vm1687, %v1663, %v1377
        %v1697 = vsel %vm1687, %v1664, %v1379
        %v1698 = vsel %vm1687, %v1665, %v1381
        %v1699 = vsel %vm1687, %v1666, %v1383
        %v1700 = vsel %vm1687, %v1667, %v1385
        %v1701 = vsel %vm1687, %v1668, %v1387
        %v1702 = vsel %vm1687, %v1669, %v1389
        %v1703 = vsel %vm1687, %v1670, %v1391
        %v1704 = vsel %vm1687, %v1671, %v1393
        %v1705 = vsel %vm1687, %v1672, %v1395
        %v1706 = vsel %vm1687, %v1673, %v1397
        %v1707 = vsel %vm1687, %v1674, %v1399
        %v1708 = vsel %vm1687, %v1675, %v1401
        %v1709 = vsel %vm1687, %v1676, %v1403
        %v1710 = vsel %vm1687, %v1677, %v1405
        %v1711 = vsel %vm1687, %v1678, %v1407
        %v1712 = vsel %vm1687, %v1679, %v1409
        %v1713 = vsel %vm1687, %v1680, %v1411
        %v1714 = vsel %vm1687, %v1681, %v1413
        %v1715 = vsel %vm1687, %v1682, %v1415
        %v1716 = vsel %vm1687, %v1683, %v1417
        %v1717 = vsel %vm1687, %v1684, %v1419
        %v1718 = vsel %vm1687, %v1685, %v1421
        %v1719 = vsel %vm1687, %v1686, %v1423
        %v1720 = vld [vmem:[%s1] sm:$0xff]
        %v1721 = vld [vmem:[%s1 + $0x8] sm:$0xff]
        %v1722 = vld [vmem:[%s1 + $0x10] sm:$0xff]
        %v1723 = vld [vmem:[%s1 + $0x18] sm:$0xff]
        %vm1724 = vcmask 293888
        %v1726 = vsel %vm1724, %v1720, 0
        %v1729 = vsel %vm1724, %v1721, 0
        %v1732 = vsel %vm1724, %v1722, 0
        %v1735 = vsel %vm1724, %v1723, 0
        %v1738 = vsel %vm1724, %v1688, 0
        %v1741 = vsel %vm1724, %v1689, 0
        %v1744 = vsel %vm1724, %v1690, 0
        %v1747 = vsel %vm1724, %v1691, 0
        %v1750 = vsel %vm1724, %v1692, 0
        %v1753 = vsel %vm1724, %v1693, 0
        %v1756 = vsel %vm1724, %v1694, 0
        %v1759 = vsel %vm1724, %v1695, 0
        %v1762 = vsel %vm1724, %v1696, 0
        %v1765 = vsel %vm1724, %v1697, 0
        %v1768 = vsel %vm1724, %v1698, 0
        %v1771 = vsel %vm1724, %v1699, 0
        %v1774 = vsel %vm1724, %v1700, 0
        %v1777 = vsel %vm1724, %v1701, 0
        %v1780 = vsel %vm1724, %v1702, 0
        %v1783 = vsel %vm1724, %v1703, 0
        %v1786 = vsel %vm1724, %v1704, 0
        %v1789 = vsel %vm1724, %v1705, 0
        %v1792 = vsel %vm1724, %v1706, 0
        %v1795 = vsel %vm1724, %v1707, 0
        %v1798 = vsel %vm1724, %v1708, 0
        %v1801 = vsel %vm1724, %v1709, 0
        %v1804 = vsel %vm1724, %v1710, 0
        %v1807 = vsel %vm1724, %v1711, 0
        %v1810 = vsel %vm1724, %v1712, 0
        %v1813 = vsel %vm1724, %v1713, 0
        %v1816 = vsel %vm1724, %v1714, 0
        %v1819 = vsel %vm1724, %v1715, 0
        %v1822 = vsel %vm1724, %v1716, 0
        %v1825 = vsel %vm1724, %v1717, 0
        %v1828 = vsel %vm1724, %v1718, 0
        %v1831 = vsel %vm1724, %v1719, 0
        %1833 = vmatprep.subr.mxu0 0.0
        %1834 = vmatpush1.xpose.msra.mxu0 %v1783
        %1835 = vmatprep.subr.mxu0 0.0
        %1836 = vmatpush1.xpose.msra.mxu0 %v1780
        %1837 = vmatprep.subr.mxu0 0.0
        %1838 = vmatpush1.xpose.msra.mxu0 %v1777
        %1839 = vmatprep.subr.mxu0 0.0
        %1840 = vmatpush1.xpose.msra.mxu0 %v1774
        %1841 = vmatprep.subr.mxu0 0.0
        %1842 = vmatpush1.xpose.msra.mxu0 %v1771
        %1843 = vmatprep.subr.mxu0 0.0
        %1844 = vmatpush1.xpose.msra.mxu0 %v1768
        %1845 = vmatprep.subr.mxu0 0.0
        %1846 = vmatpush1.xpose.msra.mxu0 %v1765
        %1847 = vmatprep.subr.mxu0 0.0
        %1848 = vmatpush1.xpose.msra.mxu0 %v1762
        %1849 = vmatprep.subr.mxu0 0.0
        %1850 = vmatpush1.xpose.msra.mxu0 %v1759
        %1851 = vmatprep.subr.mxu0 0.0
        %1852 = vmatpush1.xpose.msra.mxu0 %v1756
        %1853 = vmatprep.subr.mxu0 0.0
        %1854 = vmatpush1.xpose.msra.mxu0 %v1753
        %1855 = vmatprep.subr.mxu0 0.0
        %1856 = vmatpush1.xpose.msra.mxu0 %v1750
        %1857 = vmatprep.subr.mxu0 0.0
        %1858 = vmatpush1.xpose.msra.mxu0 %v1747
        %1859 = vmatprep.subr.mxu0 0.0
        %1860 = vmatpush1.xpose.msra.mxu0 %v1744
        %1861 = vmatprep.subr.mxu0 0.0
        %1862 = vmatpush1.xpose.msra.mxu0 %v1741
        %1863 = vmatprep.subr.mxu0 0.0
        %1864 = vmatpush1.xpose.msra.mxu0 %v1738
        %1865 = vmatprep.subr.mxu0 0.0
        %1866 = vmatpush2.xpose.msra.mxu0 %v1831
        %1867 = vmatprep.subr.mxu0 0.0
        %1868 = vmatpush2.xpose.msra.mxu0 %v1828
        %1869 = vmatprep.subr.mxu0 0.0
        %1870 = vmatpush2.xpose.msra.mxu0 %v1825
        %1871 = vmatprep.subr.mxu0 0.0
        %1872 = vmatpush2.xpose.msra.mxu0 %v1822
        %1873 = vmatprep.subr.mxu0 0.0
        %1874 = vmatpush2.xpose.msra.mxu0 %v1819
        %1875 = vmatprep.subr.mxu0 0.0
        %1876 = vmatpush2.xpose.msra.mxu0 %v1816
        %1877 = vmatprep.subr.mxu0 0.0
        %1878 = vmatpush2.xpose.msra.mxu0 %v1813
        %1879 = vmatprep.subr.mxu0 0.0
        %1880 = vmatpush2.xpose.msra.mxu0 %v1810
        %1881 = vmatprep.subr.mxu0 0.0
        %1882 = vmatpush2.xpose.msra.mxu0 %v1807
        %1883 = vmatprep.subr.mxu0 0.0
        %1884 = vmatpush2.xpose.msra.mxu0 %v1804
        %1885 = vmatprep.subr.mxu0 0.0
        %1886 = vmatpush2.xpose.msra.mxu0 %v1801
        %1887 = vmatprep.subr.mxu0 0.0
        %1888 = vmatpush2.xpose.msra.mxu0 %v1798
        %1889 = vmatprep.subr.mxu0 0.0
        %1890 = vmatpush2.xpose.msra.mxu0 %v1795
        %1891 = vmatprep.subr.mxu0 0.0
        %1892 = vmatpush2.xpose.msra.mxu0 %v1792
        %1893 = vmatprep.subr.mxu0 0.0
        %1894 = vmatpush2.xpose.msra.mxu0 %v1789
        %1895 = vmatprep.subr.mxu0 0.0
        %1896 = vmatpush2.xpose.msra.mxu0 %v1786
        %1897 = vmatprep.mubr.f32.mxu0 0.0
        %1898 = vmatmul.mubr.f32.gmra.mxu0 %v1726
        %v1899 = vpop.f32.mrf.mxu0
        %v1900 = vadd.f32 0.0, %v1899
        %v1901 = vpop.f32.mrf.mxu0
        %v1902 = vadd.f32 0.0, %v1901
        %1903 = vmatprep.mubr.f32.mxu0 0.0
        %1904 = vmatmul.mubr.f32.gmra.mxu0 %v1729
        %v1905 = vpop.f32.mrf.mxu0
        %v1906 = vadd.f32 0.0, %v1905
        %v1907 = vpop.f32.mrf.mxu0
        %v1908 = vadd.f32 0.0, %v1907
        %1909 = vmatprep.mubr.f32.mxu0 0.0
        %1910 = vmatmul.mubr.f32.gmra.mxu0 %v1732
        %v1911 = vpop.f32.mrf.mxu0
        %v1912 = vadd.f32 0.0, %v1911
        %v1913 = vpop.f32.mrf.mxu0
        %v1914 = vadd.f32 0.0, %v1913
        %1915 = vmatprep.mubr.f32.mxu0 0.0
        %1916 = vmatmul.mubr.f32.gmra.mxu0 %v1735
        %v1917 = vpop.f32.mrf.mxu0
        %v1918 = vadd.f32 0.0, %v1917
        %v1919 = vpop.f32.mrf.mxu0
        %v1920 = vadd.f32 0.0, %v1919
        %1921 = vdwg.mxu0
        %v1922 = vadd.f32 %v1900, %v1902
        %1923 = vadd.xlane.f32.xlu0 %v1922
        %v1924 = vpop.xlane.xlu0 %1923
        %v1925 = vadd.f32 %v1906, %v1908
        %1926 = vadd.xlane.f32.xlu0 %v1925
        %v1927 = vpop.xlane.xlu0 %1926
        %v1928 = vadd.f32 %v1912, %v1914
        %1929 = vadd.xlane.f32.xlu0 %v1928
        %v1930 = vpop.xlane.xlu0 %1929
        %v1931 = vadd.f32 %v1918, %v1920
        %1932 = vadd.xlane.f32.xlu0 %v1931
        %v1933 = vpop.xlane.xlu0 %1932
        %v1934 = vmul.f32 %v1900, %v1900
        %v1935 = vmul.f32 %v1902, %v1902
        %v1936 = vmul.f32 %v1906, %v1906
        %v1937 = vmul.f32 %v1908, %v1908
        %v1938 = vmul.f32 %v1912, %v1912
        %v1939 = vmul.f32 %v1914, %v1914
        %v1940 = vmul.f32 %v1918, %v1918
        %v1941 = vmul.f32 %v1920, %v1920
        %v1942 = vadd.f32 %v1934, %v1935
        %1943 = vadd.xlane.f32.xlu0 %v1942
        %v1944 = vpop.xlane.xlu0 %1943
        %v1945 = vadd.f32 %v1936, %v1937
        %1946 = vadd.xlane.f32.xlu0 %v1945
        %v1947 = vpop.xlane.xlu0 %1946
        %v1948 = vadd.f32 %v1938, %v1939
        %1949 = vadd.xlane.f32.xlu0 %v1948
        %v1950 = vpop.xlane.xlu0 %1949
        %v1951 = vadd.f32 %v1940, %v1941
        %1952 = vadd.xlane.f32.xlu0 %v1951
        %v1953 = vpop.xlane.xlu0 %1952
        %v1954 = vadd.f32 %v1924, %v1927
        %v1955 = vadd.f32 %v1954, %v1930
        %v1956 = vadd.f32 %v1955, %v1933
        %v1957 = vadd.f32 %v1944, %v1947
        %v1958 = vadd.f32 %v1957, %v1950
        %v1959 = vadd.f32 %v1958, %v1953
        %v1960 = vmul.f32 %v1956, 0.0009765625
        %v1961 = vmul.f32 %v1959, 0.0009765625
        %v1962 = vmul.f32 %v1960, %v1960
        %v1963 = vsub.f32 %v1961, %v1962
        %v1964 = vadd.f32 %v1963, 1e-05
        %v1965 = vrsqrt.pop %v1964
        %v1966 = vsub.f32 %v1900, %v1960
        %v1967 = vsub.f32 %v1902, %v1960
        %v1968 = vmul.f32 %v1966, %v1965
        %v1969 = vmul.f32 %v1967, %v1965
        %vm1970 = vcmp.gt.f32.partialorder %v1968, 0.0
        %vm1971 = vcmp.gt.f32.partialorder %v1969, 0.0
        %v1972 = vmul.f32 %v1968, 0.2
        %v1973 = vmul.f32 %v1969, 0.2
        %v1974 = vsel %vm1970, %v1968, %v1972
        %v1975 = vsel %vm1971, %v1969, %v1973
        %1976 = vst [vmem:[%s136] sm:$0xff] %v1974
        %1977 = vst [vmem:[%s136 + $0x8] sm:$0xff] %v1975
        %v1978 = vsub.f32 %v1906, %v1960
        %v1979 = vsub.f32 %v1908, %v1960
        %v1980 = vmul.f32 %v1978, %v1965
        %v1981 = vmul.f32 %v1979, %v1965
        %vm1982 = vcmp.gt.f32.partialorder %v1980, 0.0
        %vm1983 = vcmp.gt.f32.partialorder %v1981, 0.0
        %v1984 = vmul.f32 %v1980, 0.2
        %v1985 = vmul.f32 %v1981, 0.2
        %v1986 = vsel %vm1982, %v1980, %v1984
        %v1987 = vsel %vm1983, %v1981, %v1985
        %s1988 = scalar_lea.vmem %s136, 16 [#allocation2]
        %1989 = vst [vmem:[%s1988] sm:$0xff] %v1986
        %1990 = vst [vmem:[%s1988 + $0x8] sm:$0xff] %v1987
        %v1991 = vsub.f32 %v1912, %v1960
        %v1992 = vsub.f32 %v1914, %v1960
        %v1993 = vmul.f32 %v1991, %v1965
        %v1994 = vmul.f32 %v1992, %v1965
        %vm1995 = vcmp.gt.f32.partialorder %v1993, 0.0
        %vm1996 = vcmp.gt.f32.partialorder %v1994, 0.0
        %v1997 = vmul.f32 %v1993, 0.2
        %v1998 = vmul.f32 %v1994, 0.2
        %v1999 = vsel %vm1995, %v1993, %v1997
        %v2000 = vsel %vm1996, %v1994, %v1998
        %s2001 = scalar_lea.vmem %s136, 32 [#allocation2]
        %2002 = vst [vmem:[%s2001] sm:$0xff] %v1999
        %2003 = vst [vmem:[%s2001 + $0x8] sm:$0xff] %v2000
        %v2004 = vsub.f32 %v1918, %v1960
        %v2005 = vsub.f32 %v1920, %v1960
        %v2006 = vmul.f32 %v2004, %v1965
        %v2007 = vmul.f32 %v2005, %v1965
        %vm2008 = vcmp.gt.f32.partialorder %v2006, 0.0
        %vm2009 = vcmp.gt.f32.partialorder %v2007, 0.0
        %v2010 = vmul.f32 %v2006, 0.2
        %v2011 = vmul.f32 %v2007, 0.2
        %v2012 = vsel %vm2008, %v2006, %v2010
        %v2013 = vsel %vm2009, %v2007, %v2011
        %s2014 = scalar_lea.vmem %s136, 48 [#allocation2]
        %2015 = vst [vmem:[%s2014] sm:$0xff] %v2012
        %2016 = vst [vmem:[%s2014 + $0x8] sm:$0xff] %v2013
        %s2017 = sand.u32 %s71, 1
        %s2018 = scalar_lea.sflag [#allocation3], %s2017
        %s2019 = sand.u32 %s71, 1
        %s2020 = smul.addr %s2019, 64
        %s2021 = scalar_lea.vmem [#allocation2], %s2020
        // Predicated region
        $region29: #{tpu_custom_call.1} parent=27 // pred_check
          %p2022 = pneg %p81
        $region30: #{tpu_custom_call.1} parent=27 // pred_check_branch
          %2024 = sbr.rel (%p2022) target = $region32
        $region31: #{tpu_custom_call.1} parent=27 // pred_region
          %s2026 = ssub.s32 1024, 1024
          %2027 = vsyncadd %s2018, %s2026
          %s2028 = smul.addr %s16, 8
          %s2029 = smul.addr %s2028, 128
          %s2030 = scalar_lea.hbm %s2, %s2029
          %s2031 = sshll.u32 %s2021, 4
          %s2032 = int_to_ptr.vmem [resolvable:$true] %s2031
          %2037 = dma.vmem_to_hbm [thread:$0]  %s2032, 1024, %s2030, %s2018, 256, 256, 16
        $region32: #{tpu_custom_call.1} parent=27 // pred_fallthru
          _
      $region28: #{tpu_custom_call.1} parent=5 // pred_fallthru
        _
      %p2038 = scmp.le.s32.totalorder 2, %s11
      // Predicated region
      $region33: #{tpu_custom_call.1} parent=5 // pred_check
        %p2039 = pneg %p2038
      $region34: #{tpu_custom_call.1} parent=5 // pred_check_branch
        %2041 = sbr.rel (%p2039) target = $region36
      $region35: #{tpu_custom_call.1} parent=5 // pred_region
        %s2042 = ssub.s32 %s11, 2
        // Predicated region
        $region37: #{tpu_custom_call.1} parent=35 // pred_check
          %p2043 = pneg %p87
        $region38: #{tpu_custom_call.1} parent=35 // pred_check_branch
          %2045 = sbr.rel (%p2043) target = $region40
        $region39: #{tpu_custom_call.1} parent=35 // pred_region
          %s2046 = sand.u32 %s72, 1
          %s2047 = scalar_lea.sflag [#allocation3], %s2046
          %s2048 = sand.u32 %s72, 1
          %s2049 = smul.addr %s2048, 64
          %s2050 = scalar_lea.vmem [#allocation2], %s2049
          %2051 = dma.done %s2047, 1024
        $region40: #{tpu_custom_call.1} parent=35 // pred_fallthru
          _
      $region36: #{tpu_custom_call.1} parent=5 // pred_fallthru
        _
    $region6: #{tpu_custom_call.1} parent=1 // loop_footer
      %s15 = sadd.s32 1, %s11
    $region7: #{tpu_custom_call.1} parent=1 // loop_footer_branch
      %10 = sbr.rel target = $region3
    $region8: #{tpu_custom_call.1} parent=1 // loop_exit
      _
    %2052 = vsyncpa [#allocation3], 1
    %s2053 = scalar_lea.sflag [#allocation3], 1
    %2054 = vsyncpa %s2053, 1

</llo_original>
